<compile_context>
chip_gen: v7x
topology: tpu7x:2x2x1
jax: 0.10.0
libtpu: 0.0.40
codegen_flags: <defaults>
</compile_context>

<pallas_src>
import jax
import jax.numpy as jnp
from jax.experimental import pallas as pl
from jax.experimental.pallas import tpu as pltpu

EPS = 1e-5


# ----------------------------------------------------------------------------- kernels
def _make_stage1_kernel(nb, lo, nrows, has_ds, q_ds):
    """conv1 (+ 1x1 downsample conv) for an Nb-sample block; raw outputs + BN stats."""

    def kernel(*refs):
        if has_ds:
            xr_ref, w1_ref, wd_ref, y1_ref, s1_ref, yd_ref, sd_ref = refs
        else:
            xr_ref, w1_ref, y1_ref, s1_ref = refs

        cout = y1_ref.shape[-1]
        sum1 = jnp.zeros((lo, cout), jnp.float32)
        sq1 = jnp.zeros((lo, cout), jnp.float32)
        if has_ds:
            sumd = jnp.zeros((lo, cout), jnp.float32)
            sqd = jnp.zeros((lo, cout), jnp.float32)

        for i in range(nb):                       # static unroll over the block samples
            xr = xr_ref[i]                        # (Rr, s*Cin) bf16
            # conv1: stride phases are pre-folded into the lane (contraction) axis by
            # the wrapper reshape; accumulate the row-shifted taps on the MXU in f32.
            y = jnp.dot(xr[0:lo, :], w1_ref[0], preferred_element_type=jnp.float32)
            for r in range(1, nrows):
                y += jnp.dot(xr[r:r + lo, :], w1_ref[r],
                             preferred_element_type=jnp.float32)
            yq = y.astype(jnp.bfloat16)
            y1_ref[i] = yq
            yf = yq.astype(jnp.float32)           # stats over the values BN will see
            sum1 += yf
            sq1 += yf * yf

            if has_ds:
                # 1x1 stride-s downsample conv: the subsampling is one phase block of
                # xr, selected by zero rows in the folded (s*Cin, Cout) weight.
                yd = jnp.dot(xr[q_ds:q_ds + lo, :], wd_ref[...],
                             preferred_element_type=jnp.float32)
                ydq = yd.astype(jnp.bfloat16)
                yd_ref[i] = ydq
                ydf = ydq.astype(jnp.float32)
                sumd += ydf
                sqd += ydf * ydf

        # One (1, 2, C) stat write per grid step (per-block partial sums).
        s1_ref[0, 0:1, :] = jnp.sum(sum1, axis=0, keepdims=True)
        s1_ref[0, 1:2, :] = jnp.sum(sq1, axis=0, keepdims=True)
        if has_ds:
            sd_ref[0, 0:1, :] = jnp.sum(sumd, axis=0, keepdims=True)
            sd_ref[0, 1:2, :] = jnp.sum(sqd, axis=0, keepdims=True)

    return kernel


def _make_stage2_kernel(nb, lo, cout):
    """bn1 (per-channel FMA) + ReLU + conv2 for an Nb-sample block; raw out + BN stats."""

    def kernel(y1_ref, sc1_ref, sh1_ref, w2_ref, y2_ref, s2_ref, hpad_ref):
        # bn1 + ReLU on the whole block at once (pure VPU work, (1,C) broadcast FMA).
        h = jnp.maximum(
            y1_ref[...].astype(jnp.float32) * sc1_ref[...] + sh1_ref[...], 0.0)

        # conv2 halo (pad=1): h goes into a persistent VMEM scratch.  The two halo
        # rows are re-zeroed every step (two tiny stores) because under megacore
        # sharding each core owns its own scratch instance, so a program_id()==0-only
        # init would leave one core's halos uninitialized.
        zero_row = jnp.zeros((nb, 1, cout), jnp.bfloat16)
        hpad_ref[:, 0:1, :] = zero_row
        hpad_ref[:, lo + 1:lo + 2, :] = zero_row
        hpad_ref[:, 1:lo + 1, :] = h.astype(jnp.bfloat16)

        sum2 = jnp.zeros((lo, cout), jnp.float32)
        sq2 = jnp.zeros((lo, cout), jnp.float32)
        for i in range(nb):
            hp = hpad_ref[i]                      # (Lo+2, C) bf16
            y = jnp.dot(hp[0:lo, :], w2_ref[0], preferred_element_type=jnp.float32)
            for k in range(1, 3):
                y += jnp.dot(hp[k:k + lo, :], w2_ref[k],
                             preferred_element_type=jnp.float32)
            yq = y.astype(jnp.bfloat16)
            y2_ref[i] = yq
            yf = yq.astype(jnp.float32)
            sum2 += yf
            sq2 += yf * yf

        s2_ref[0, 0:1, :] = jnp.sum(sum2, axis=0, keepdims=True)
        s2_ref[0, 1:2, :] = jnp.sum(sq2, axis=0, keepdims=True)

    return kernel


def _make_stage3_kernel(has_ds):
    """bn2 + residual (optionally bn_ds(downsample)) + ReLU; bf16 writeback."""

    def kernel(*refs):
        if has_ds:
            y2_ref, sc2_ref, sh2_ref, yd_ref, scd_ref, shd_ref, o_ref = refs
            ident = yd_ref[...].astype(jnp.float32) * scd_ref[...] + shd_ref[...]
        else:
            y2_ref, sc2_ref, sh2_ref, xi_ref, o_ref = refs
            ident = xi_ref[...].astype(jnp.float32)
        y2 = y2_ref[...].astype(jnp.float32) * sc2_ref[...] + sh2_ref[...]
        o_ref[...] = jnp.maximum(y2 + ident, 0.0).astype(o_ref.dtype)

    return kernel


# -------------------------------------------------------------------------- spec helpers
def _batch_block_spec(block_rest, nb):
    """(N, A, B) array blocked as (Nb, A, B) over a 1-D batch-block grid."""
    nd = 1 + len(block_rest)
    return pl.BlockSpec((nb,) + tuple(block_rest), lambda g: (g,) + (0,) * (nd - 1))


def _replicated_spec(shape):
    nd = len(shape)
    return pl.BlockSpec(tuple(shape), lambda g: (0,) * nd)


def _pick_batch_block(n, per_sample_bytes, budget_bytes=4 << 20, unroll_cap=32):
    """Largest divisor of N keeping a block within ~budget (double-buffered blocks then
    stay well under v7x's scoped-VMEM default), capped for unroll/compile sanity."""
    nb = max(1, min(n, unroll_cap, budget_bytes // max(per_sample_bytes, 1)))
    if n >= 4:
        nb = min(nb, n // 2)        # keep >=2 grid steps: pipelining + megacore balance
    while n % nb:
        nb -= 1
    return max(nb, 1)


def _affine_from_stats(stats, gamma, beta, count):
    """Fold BN batch stats + gamma/beta into one per-channel scale & shift (FMA form)."""
    tot = jnp.sum(stats.astype(jnp.float32), axis=0)           # (2, C)
    mean = tot[0] / count
    # TODO(synk): single-pass E[x^2]-E[x]^2 cancels when |mean| >> std; move to a
    # shifted / Welford-style accumulation if that regime matters.
    var = jnp.maximum(tot[1] / count - mean * mean, 0.0)       # biased var (BN training)
    scale = gamma * jax.lax.rsqrt(var + EPS)
    shift = beta - mean * scale
    return scale.reshape(1, -1), shift.reshape(1, -1)


# ------------------------------------------------------------------------------ forward
def basic_block_forward_nlc(x_nlc, params, stride):
    """Channels-last BasicBlock forward.  x_nlc: (N, L, Cin) -> (N, Lo, Cout) bf16."""
    w1, g1, b1, w2, g2, b2, wd, gd, bd = params
    N, L, Cin = x_nlc.shape
    Cout = w1.shape[0]
    s = int(stride)
    has_ds = (s != 1) or (Cin != Cout)
    Lo = (L - 1) // s + 1
    nrows = 1 + (3 - 1) // s           # stride-folded rows one k=3 window spans
    Rr = Lo + nrows - 1
    count = float(N * Lo)
    cparams = pltpu.CompilerParams(dimension_semantics=("parallel",))

    # ---- batch blocking: Nb samples per grid step (sized for ~MiB DMAs, v7x VMEM) ----
    per_sample_bytes = max(
        (Rr * s * Cin + (2 if has_ds else 1) * Lo * Cout) * 2,        # stage 1 blocks
        (2 * Lo * Cout) * 2 + (Lo + 2) * Cout * 2,                    # stage 2 blocks
        (2 * Lo * Cout) * 2 + Lo * Cout * 2,                          # stage 3 blocks
    )
    Nb = _pick_batch_block(N, per_sample_bytes)
    G = N // Nb

    # ---- layout plumbing (bf16 pad once + FREE reshape; no tap replication in HBM) ---
    # xr[n, r, p*Cin + c] == x_padded[n, r*s + p, c]
    xb = x_nlc.astype(jnp.bfloat16)
    need = s * Rr
    xp = jnp.pad(xb, ((0, 0), (1, max(0, need - L - 1)), (0, 0)))[:, :need, :]
    xr = xp.reshape(N, Rr, s * Cin)

    # conv1 weights matching xr's (row, phase) folding: w1f[r, p*Cin+c, o]=w1[o,c,r*s+p]
    f1 = nrows * s * Cin
    w1t = jnp.transpose(w1, (2, 1, 0)).reshape(3 * Cin, Cout)
    if f1 > 3 * Cin:
        w1t = jnp.concatenate([w1t, jnp.zeros((f1 - 3 * Cin, Cout), w1t.dtype)], axis=0)
    w1f = w1t.reshape(nrows, s * Cin, Cout).astype(jnp.bfloat16)
    w2f = jnp.transpose(w2, (2, 1, 0)).astype(jnp.bfloat16)          # (3, Cout, Cout)

    act = jax.ShapeDtypeStruct((N, Lo, Cout), jnp.bfloat16)
    stat = jax.ShapeDtypeStruct((G, 2, Cout), jnp.float32)
    act_spec = _batch_block_spec((Lo, Cout), Nb)
    stat_spec = pl.BlockSpec((1, 2, Cout), lambda g: (g, 0, 0))

    # ---------------- stage 1: conv1 (+ downsample conv) + BN partial stats ----------
    if has_ds:
        p_ds, q_ds = 1 % s, 1 // s
        wdf = jnp.zeros((s * Cin, Cout), jnp.float32)
        wdf = wdf.at[p_ds * Cin:(p_ds + 1) * Cin, :].set(wd[:, :, 0].T)
        wdf = wdf.astype(jnp.bfloat16)
        y1, st1, yd, std = pl.pallas_call(
            _make_stage1_kernel(Nb, Lo, nrows, True, q_ds),
            grid=(G,),
            in_specs=[_batch_block_spec((Rr, s * Cin), Nb),
                      _replicated_spec((nrows, s * Cin, Cout)),
                      _replicated_spec((s * Cin, Cout))],
            out_specs=(act_spec, stat_spec, act_spec, stat_spec),
            out_shape=(act, stat, act, stat),
            compiler_params=cparams,
        )(xr, w1f, wdf)
    else:
        y1, st1 = pl.pallas_call(
            _make_stage1_kernel(Nb, Lo, nrows, False, 0),
            grid=(G,),
            in_specs=[_batch_block_spec((Rr, s * Cin), Nb),
                      _replicated_spec((nrows, s * Cin, Cout))],
            out_specs=(act_spec, stat_spec),
            out_shape=(act, stat),
            compiler_params=cparams,
        )(xr, w1f)

    sc1, sh1 = _affine_from_stats(st1, g1, b1, count)

    # ---------------- stage 2: bn1 + ReLU + conv2 + BN partial stats ----------------
    y2, st2 = pl.pallas_call(
        _make_stage2_kernel(Nb, Lo, Cout),
        grid=(G,),
        in_specs=[act_spec,
                  _replicated_spec((1, Cout)), _replicated_spec((1, Cout)),
                  _replicated_spec((3, Cout, Cout))],
        out_specs=(act_spec, stat_spec),
        out_shape=(act, stat),
        scratch_shapes=[pltpu.VMEM((Nb, Lo + 2, Cout), jnp.bfloat16)],
        compiler_params=cparams,
    )(y1, sc1, sh1, w2f)

    sc2, sh2 = _affine_from_stats(st2, g2, b2, count)

    # ---------------- stage 3: bn2 + residual + ReLU (bf16 writeback) ----------------
    out_sds = jax.ShapeDtypeStruct((N, Lo, Cout), jnp.bfloat16)
    if has_ds:
        scd, shd = _affine_from_stats(std, gd, bd, count)
        out = pl.pallas_call(
            _make_stage3_kernel(True),
            grid=(G,),
            in_specs=[act_spec,
                      _replicated_spec((1, Cout)), _replicated_spec((1, Cout)),
                      act_spec,
                      _replicated_spec((1, Cout)), _replicated_spec((1, Cout))],
            out_specs=act_spec,
            out_shape=out_sds,
            compiler_params=cparams,
        )(y2, sc2, sh2, yd, scd, shd)
    else:
        out = pl.pallas_call(
            _make_stage3_kernel(False),
            grid=(G,),
            in_specs=[act_spec,
                      _replicated_spec((1, Cout)), _replicated_spec((1, Cout)),
                      act_spec],
            out_specs=act_spec,
            out_shape=out_sds,
            compiler_params=cparams,
        )(y2, sc2, sh2, xb)
    return out


def basic_block_forward(x_ncl, params, stride):
    """PyTorch-facing wrapper: (N, Cin, L) float32 -> (N, Cout, Lo) float32."""
    # Cast before transposing so the boundary transpose moves half the bytes.
    x_nlc = jnp.transpose(x_ncl.astype(jnp.bfloat16), (0, 2, 1))
    out_nlc = basic_block_forward_nlc(x_nlc, params, stride)
    # bf16 transpose + f32 cast fuse into one XLA op.
    # TODO(synk): fuse this transpose into stage 3 (in-kernel vxpose, NCL lane-dense out).
    return jnp.transpose(out_nlc, (0, 2, 1)).astype(jnp.float32)


# ---------------------------------------------------------------------------- reference
def basic_block_reference(x_ncl, params, stride):
    """Pure-JAX f32 reference replicating the PyTorch module (training-mode BN)."""
    w1, g1, b1, w2, g2, b2, wd, gd, bd = params
    Cin = x_ncl.shape[1]
    Cout = w1.shape[0]
    has_ds = (stride != 1) or (Cin != Cout)

    def conv(x, w, s, p):
        return jax.lax.conv_general_dilated(
            x, w, window_strides=(s,), padding=[(p, p)],
            dimension_numbers=('NCH', 'OIH', 'NCH'),
            precision=jax.lax.Precision.HIGHEST)

    def bn(x, g, b):
        mean = jnp.mean(x, axis=(0, 2), keepdims=True)
        var = jnp.mean((x - mean) ** 2, axis=(0, 2), keepdims=True)
        return (x - mean) / jnp.sqrt(var + EPS) * g[None, :, None] + b[None, :, None]

    out = jnp.maximum(bn(conv(x_ncl, w1, stride, 1), g1, b1), 0.0)
    out = bn(conv(out, w2, 1, 1), g2, b2)
    ident = bn(conv(x_ncl, wd, stride, 0), gd, bd) if has_ds else x_ncl
    return jnp.maximum(out + ident, 0.0)


if __name__ == "__main__":
    fwd = jax.jit(basic_block_forward, static_argnums=2)

    def run_case(key, N, Cin, Cout, L, stride):
        ks = jax.random.split(key, 10)
        has_ds = (stride != 1) or (Cin != Cout)
        x = jax.random.normal(ks[0], (N, Cin, L), jnp.float32)
        w1 = 0.2 * jax.random.normal(ks[1], (Cout, Cin, 3), jnp.float32)
        w2 = 0.2 * jax.random.normal(ks[2], (Cout, Cout, 3), jnp.float32)
        wd = 0.2 * jax.random.normal(ks[3], (Cout, Cin, 1), jnp.float32) if has_ds else None
        g1 = 1.0 + 0.1 * jax.random.normal(ks[4], (Cout,), jnp.float32)
        b1 = 0.1 * jax.random.normal(ks[5], (Cout,), jnp.float32)
        g2 = 1.0 + 0.1 * jax.random.normal(ks[6], (Cout,), jnp.float32)
        b2 = 0.1 * jax.random.normal(ks[7], (Cout,), jnp.float32)
        gd = 1.0 + 0.1 * jax.random.normal(ks[8], (Cout,), jnp.float32) if has_ds else None
        bd = 0.1 * jax.random.normal(ks[9], (Cout,), jnp.float32) if has_ds else None
        params = (w1, g1, b1, w2, g2, b2, wd, gd, bd)

        out = jax.block_until_ready(fwd(x, params, stride))
        ref = jax.block_until_ready(basic_block_reference(x, params, stride))
        Lo = (L - 1) // stride + 1
        assert out.shape == (N, Cout, Lo), out.shape
        # bf16 MXU operands + bf16 intermediate/output storage vs. an f32
        # HIGHEST-precision reference -> loosened tolerance.
        if not jnp.allclose(out, ref, atol=6e-2, rtol=6e-2):
            raise AssertionError(
                f"mismatch (stride={stride}, Cin={Cin}, Cout={Cout}): "
                f"max abs err = {float(jnp.max(jnp.abs(out - ref)))}")

    key = jax.random.PRNGKey(0)
    k1, k2 = jax.random.split(key)
    run_case(k1, N=2, Cin=4, Cout=8, L=16, stride=2)   # downsample path (stride 2, C change)
    run_case(k2, N=2, Cin=8, Cout=8, L=16, stride=1)   # identity path (no downsample args)
    print("KERNEL_OK")
</pallas_src>

<mosaic_0001>
module attributes {stable_mosaic.version = 11 : i64} {
  func.func @kernel(%arg0: i32, %arg1: memref<2x8x8xbf16, #tpu.memory_space<vmem>>, %arg2: memref<1x8xf32, #tpu.memory_space<vmem>>, %arg3: memref<1x8xf32, #tpu.memory_space<vmem>>, %arg4: memref<2x8x8xbf16, #tpu.memory_space<vmem>>, %arg5: memref<1x8xf32, #tpu.memory_space<vmem>>, %arg6: memref<1x8xf32, #tpu.memory_space<vmem>>, %arg7: memref<2x8x8xbf16, #tpu.memory_space<vmem>>) attributes {dimension_semantics = [#tpu.dimension_semantics<parallel>], iteration_bounds = array<i64: 1>, scalar_prefetch = 0 : i64, scratch_operands = 0 : i64, tpu.core_type = #tpu.core_type<tc>, window_params = [{transform_indices = @transform_0, window_bounds = array<i64: 2, 8, 8>}, {pipeline_mode = #tpu.pipeline_mode<synchronous>, transform_indices = @transform_1, window_bounds = array<i64: 1, 8>}, {pipeline_mode = #tpu.pipeline_mode<synchronous>, transform_indices = @transform_2, window_bounds = array<i64: 1, 8>}, {transform_indices = @transform_3, window_bounds = array<i64: 2, 8, 8>}, {pipeline_mode = #tpu.pipeline_mode<synchronous>, transform_indices = @transform_4, window_bounds = array<i64: 1, 8>}, {pipeline_mode = #tpu.pipeline_mode<synchronous>, transform_indices = @transform_5, window_bounds = array<i64: 1, 8>}, {transform_indices = @transform_6, window_bounds = array<i64: 2, 8, 8>}]} {
    %c0 = arith.constant 0 : index
    %c0_0 = arith.constant 0 : index
    %c0_1 = arith.constant 0 : index
    %0 = vector.load %arg4[%c0, %c0_0, %c0_1] : memref<2x8x8xbf16, #tpu.memory_space<vmem>>, vector<2x8x8xbf16>
    %1 = arith.extf %0 : vector<2x8x8xbf16> to vector<2x8x8xf32>
    %c0_2 = arith.constant 0 : index
    %c0_3 = arith.constant 0 : index
    %2 = vector.load %arg5[%c0_2, %c0_3] : memref<1x8xf32, #tpu.memory_space<vmem>>, vector<1x8xf32>
    %3 = vector.shape_cast %2 : vector<1x8xf32> to vector<1x1x8xf32>
    %4 = vector.broadcast %3 : vector<1x1x8xf32> to vector<2x8x8xf32>
    %5 = arith.mulf %1, %4 : vector<2x8x8xf32>
    %c0_4 = arith.constant 0 : index
    %c0_5 = arith.constant 0 : index
    %6 = vector.load %arg6[%c0_4, %c0_5] : memref<1x8xf32, #tpu.memory_space<vmem>>, vector<1x8xf32>
    %7 = vector.shape_cast %6 : vector<1x8xf32> to vector<1x1x8xf32>
    %8 = vector.broadcast %7 : vector<1x1x8xf32> to vector<2x8x8xf32>
    %9 = arith.addf %5, %8 : vector<2x8x8xf32>
    %c0_6 = arith.constant 0 : index
    %c0_7 = arith.constant 0 : index
    %c0_8 = arith.constant 0 : index
    %10 = vector.load %arg1[%c0_6, %c0_7, %c0_8] : memref<2x8x8xbf16, #tpu.memory_space<vmem>>, vector<2x8x8xbf16>
    %11 = arith.extf %10 : vector<2x8x8xbf16> to vector<2x8x8xf32>
    %c0_9 = arith.constant 0 : index
    %c0_10 = arith.constant 0 : index
    %12 = vector.load %arg2[%c0_9, %c0_10] : memref<1x8xf32, #tpu.memory_space<vmem>>, vector<1x8xf32>
    %13 = vector.shape_cast %12 : vector<1x8xf32> to vector<1x1x8xf32>
    %14 = vector.broadcast %13 : vector<1x1x8xf32> to vector<2x8x8xf32>
    %15 = arith.mulf %11, %14 : vector<2x8x8xf32>
    %c0_11 = arith.constant 0 : index
    %c0_12 = arith.constant 0 : index
    %16 = vector.load %arg3[%c0_11, %c0_12] : memref<1x8xf32, #tpu.memory_space<vmem>>, vector<1x8xf32>
    %17 = vector.shape_cast %16 : vector<1x8xf32> to vector<1x1x8xf32>
    %18 = vector.broadcast %17 : vector<1x1x8xf32> to vector<2x8x8xf32>
    %19 = arith.addf %15, %18 : vector<2x8x8xf32>
    %20 = arith.addf %19, %9 : vector<2x8x8xf32>
    %cst = arith.constant 0.000000e+00 : f32
    %21 = vector.broadcast %cst : f32 to vector<2x8x8xf32>
    %22 = arith.maximumf %20, %21 : vector<2x8x8xf32>
    %23 = arith.truncf %22 : vector<2x8x8xf32> to vector<2x8x8xbf16>
    %c0_13 = arith.constant 0 : index
    %c0_14 = arith.constant 0 : index
    %c0_15 = arith.constant 0 : index
    %24 = vector.load %arg7[%c0_13, %c0_14, %c0_15] : memref<2x8x8xbf16, #tpu.memory_space<vmem>>, vector<2x8x8xbf16>
    tpu.vector_store %arg7[%c0_13, %c0_14, %c0_15], %23 {strides = array<i32>} : memref<2x8x8xbf16, #tpu.memory_space<vmem>>, vector<2x8x8xbf16>,
    return
  }
  func.func @transform_0(%arg0: i32) -> (i32, i32, i32) {
    %c0_i32 = arith.constant 0 : i32
    %c0_i32_0 = arith.constant 0 : i32
    %c0_i32_1 = arith.constant 0 : i32
    return %arg0, %c0_i32, %c0_i32_0 : i32, i32, i32
  }
  func.func @transform_1(%arg0: i32) -> (i32, i32) {
    %c0_i32 = arith.constant 0 : i32
    %c0_i32_0 = arith.constant 0 : i32
    %c0_i32_1 = arith.constant 0 : i32
    return %c0_i32, %c0_i32_0 : i32, i32
  }
  func.func @transform_2(%arg0: i32) -> (i32, i32) {
    %c0_i32 = arith.constant 0 : i32
    %c0_i32_0 = arith.constant 0 : i32
    %c0_i32_1 = arith.constant 0 : i32
    return %c0_i32, %c0_i32_0 : i32, i32
  }
  func.func @transform_3(%arg0: i32) -> (i32, i32, i32) {
    %c0_i32 = arith.constant 0 : i32
    %c0_i32_0 = arith.constant 0 : i32
    %c0_i32_1 = arith.constant 0 : i32
    return %arg0, %c0_i32, %c0_i32_0 : i32, i32, i32
  }
  func.func @transform_4(%arg0: i32) -> (i32, i32) {
    %c0_i32 = arith.constant 0 : i32
    %c0_i32_0 = arith.constant 0 : i32
    %c0_i32_1 = arith.constant 0 : i32
    return %c0_i32, %c0_i32_0 : i32, i32
  }
  func.func @transform_5(%arg0: i32) -> (i32, i32) {
    %c0_i32 = arith.constant 0 : i32
    %c0_i32_0 = arith.constant 0 : i32
    %c0_i32_1 = arith.constant 0 : i32
    return %c0_i32, %c0_i32_0 : i32, i32
  }
  func.func @transform_6(%arg0: i32) -> (i32, i32, i32) {
    %c0_i32 = arith.constant 0 : i32
    %c0_i32_0 = arith.constant 0 : i32
    %c0_i32_1 = arith.constant 0 : i32
    return %arg0, %c0_i32, %c0_i32_0 : i32, i32, i32
  }
}

module attributes {stable_mosaic.version = 11 : i64} {
  func.func @kernel(%arg0: i32, %arg1: memref<2x8x8xbf16, #tpu.memory_space<vmem>>, %arg2: memref<1x8xf32, #tpu.memory_space<vmem>>, %arg3: memref<1x8xf32, #tpu.memory_space<vmem>>, %arg4: memref<3x8x8xbf16, #tpu.memory_space<vmem>>, %arg5: memref<2x8x8xbf16, #tpu.memory_space<vmem>>, %arg6: memref<1x2x8xf32, #tpu.memory_space<vmem>>, %arg7: memref<2x10x8xbf16, #tpu.memory_space<vmem>>) attributes {dimension_semantics = [#tpu.dimension_semantics<parallel>], iteration_bounds = array<i64: 1>, scalar_prefetch = 0 : i64, scratch_operands = 1 : i64, tpu.core_type = #tpu.core_type<tc>, window_params = [{transform_indices = @transform_0, window_bounds = array<i64: 2, 8, 8>}, {pipeline_mode = #tpu.pipeline_mode<synchronous>, transform_indices = @transform_1, window_bounds = array<i64: 1, 8>}, {pipeline_mode = #tpu.pipeline_mode<synchronous>, transform_indices = @transform_2, window_bounds = array<i64: 1, 8>}, {pipeline_mode = #tpu.pipeline_mode<synchronous>, transform_indices = @transform_3, window_bounds = array<i64: 3, 8, 8>}, {transform_indices = @transform_4, window_bounds = array<i64: 2, 8, 8>}, {transform_indices = @transform_5, window_bounds = array<i64: 1, 2, 8>}]} {
    %c0 = arith.constant 0 : index
    %c0_0 = arith.constant 0 : index
    %c0_1 = arith.constant 0 : index
    %0 = vector.load %arg1[%c0, %c0_0, %c0_1] : memref<2x8x8xbf16, #tpu.memory_space<vmem>>, vector<2x8x8xbf16>
    %1 = arith.extf %0 : vector<2x8x8xbf16> to vector<2x8x8xf32>
    %c0_2 = arith.constant 0 : index
    %c0_3 = arith.constant 0 : index
    %2 = vector.load %arg2[%c0_2, %c0_3] : memref<1x8xf32, #tpu.memory_space<vmem>>, vector<1x8xf32>
    %3 = vector.shape_cast %2 : vector<1x8xf32> to vector<1x1x8xf32>
    %4 = vector.broadcast %3 : vector<1x1x8xf32> to vector<2x8x8xf32>
    %5 = arith.mulf %1, %4 : vector<2x8x8xf32>
    %c0_4 = arith.constant 0 : index
    %c0_5 = arith.constant 0 : index
    %6 = vector.load %arg3[%c0_4, %c0_5] : memref<1x8xf32, #tpu.memory_space<vmem>>, vector<1x8xf32>
    %7 = vector.shape_cast %6 : vector<1x8xf32> to vector<1x1x8xf32>
    %8 = vector.broadcast %7 : vector<1x1x8xf32> to vector<2x8x8xf32>
    %9 = arith.addf %5, %8 : vector<2x8x8xf32>
    %cst = arith.constant 0.000000e+00 : f32
    %10 = vector.broadcast %cst : f32 to vector<2x8x8xf32>
    %11 = arith.maximumf %9, %10 : vector<2x8x8xf32>
    %cst_6 = arith.constant 0.000000e+00 : bf16
    %12 = vector.broadcast %cst_6 : bf16 to vector<2x1x8xbf16>
    %c0_7 = arith.constant 0 : index
    %c0_8 = arith.constant 0 : index
    %c0_9 = arith.constant 0 : index
    %13 = vector.load %arg7[%c0_7, %c0_8, %c0_9] : memref<2x10x8xbf16, #tpu.memory_space<vmem>>, vector<2x1x8xbf16>
    tpu.vector_store %arg7[%c0_7, %c0_8, %c0_9], %12 {strides = array<i32>} : memref<2x10x8xbf16, #tpu.memory_space<vmem>>, vector<2x1x8xbf16>,
    %c0_10 = arith.constant 0 : index
    %c9 = arith.constant 9 : index
    %c0_11 = arith.constant 0 : index
    %14 = vector.load %arg7[%c0_10, %c9, %c0_11] : memref<2x10x8xbf16, #tpu.memory_space<vmem>>, vector<2x1x8xbf16>
    tpu.vector_store %arg7[%c0_10, %c9, %c0_11], %12 {strides = array<i32>} : memref<2x10x8xbf16, #tpu.memory_space<vmem>>, vector<2x1x8xbf16>,
    %15 = arith.truncf %11 : vector<2x8x8xf32> to vector<2x8x8xbf16>
    %c0_12 = arith.constant 0 : index
    %c1 = arith.constant 1 : index
    %c0_13 = arith.constant 0 : index
    %16 = vector.load %arg7[%c0_12, %c1, %c0_13] : memref<2x10x8xbf16, #tpu.memory_space<vmem>>, vector<2x8x8xbf16>
    tpu.vector_store %arg7[%c0_12, %c1, %c0_13], %15 {strides = array<i32>} : memref<2x10x8xbf16, #tpu.memory_space<vmem>>, vector<2x8x8xbf16>,
    %cst_14 = arith.constant 0.000000e+00 : f32
    %17 = vector.broadcast %cst_14 : f32 to vector<8x8xf32>
    %cst_15 = arith.constant 0.000000e+00 : f32
    %18 = vector.broadcast %cst_15 : f32 to vector<8x8xf32>
    %c0_16 = arith.constant 0 : index
    %c0_17 = arith.constant 0 : index
    %c0_18 = arith.constant 0 : index
    %19 = vector.load %arg7[%c0_16, %c0_17, %c0_18] : memref<2x10x8xbf16, #tpu.memory_space<vmem>>, vector<1x10x8xbf16>
    %20 = vector.shape_cast %19 : vector<1x10x8xbf16> to vector<10x8xbf16>
    %21 = vector.extract_strided_slice %20 {offsets = [0, 0], sizes = [8, 8], strides = [1, 1]} : vector<10x8xbf16> to vector<8x8xbf16>
    %c0_19 = arith.constant 0 : index
    %c0_20 = arith.constant 0 : index
    %c0_21 = arith.constant 0 : index
    %22 = vector.load %arg4[%c0_19, %c0_20, %c0_21] : memref<3x8x8xbf16, #tpu.memory_space<vmem>>, vector<1x8x8xbf16>
    %23 = vector.shape_cast %22 : vector<1x8x8xbf16> to vector<8x8xbf16>
    %cst_22 = arith.constant dense<0.000000e+00> : vector<8x8xf32>
    %24 = tpu.matmul %21, %23, %cst_22 {dimension_numbers = #tpu.dot_dimension_numbers<[1], [0], [0], [1], [0, 0, 1, 1], [], []>} : vector<8x8xbf16>, vector<8x8xbf16>, vector<8x8xf32> -> vector<8x8xf32>
    %25 = vector.extract_strided_slice %20 {offsets = [1, 0], sizes = [8, 8], strides = [1, 1]} : vector<10x8xbf16> to vector<8x8xbf16>
    %c1_23 = arith.constant 1 : index
    %c0_24 = arith.constant 0 : index
    %c0_25 = arith.constant 0 : index
    %26 = vector.load %arg4[%c1_23, %c0_24, %c0_25] : memref<3x8x8xbf16, #tpu.memory_space<vmem>>, vector<1x8x8xbf16>
    %27 = vector.shape_cast %26 : vector<1x8x8xbf16> to vector<8x8xbf16>
    %cst_26 = arith.constant dense<0.000000e+00> : vector<8x8xf32>
    %28 = tpu.matmul %25, %27, %cst_26 {dimension_numbers = #tpu.dot_dimension_numbers<[1], [0], [0], [1], [0, 0, 1, 1], [], []>} : vector<8x8xbf16>, vector<8x8xbf16>, vector<8x8xf32> -> vector<8x8xf32>
    %29 = arith.addf %24, %28 : vector<8x8xf32>
    %30 = vector.extract_strided_slice %20 {offsets = [2, 0], sizes = [8, 8], strides = [1, 1]} : vector<10x8xbf16> to vector<8x8xbf16>
    %c2 = arith.constant 2 : index
    %c0_27 = arith.constant 0 : index
    %c0_28 = arith.constant 0 : index
    %31 = vector.load %arg4[%c2, %c0_27, %c0_28] : memref<3x8x8xbf16, #tpu.memory_space<vmem>>, vector<1x8x8xbf16>
    %32 = vector.shape_cast %31 : vector<1x8x8xbf16> to vector<8x8xbf16>
    %cst_29 = arith.constant dense<0.000000e+00> : vector<8x8xf32>
    %33 = tpu.matmul %30, %32, %cst_29 {dimension_numbers = #tpu.dot_dimension_numbers<[1], [0], [0], [1], [0, 0, 1, 1], [], []>} : vector<8x8xbf16>, vector<8x8xbf16>, vector<8x8xf32> -> vector<8x8xf32>
    %34 = arith.addf %29, %33 : vector<8x8xf32>
    %35 = arith.truncf %34 : vector<8x8xf32> to vector<8x8xbf16>
    %c0_30 = arith.constant 0 : index
    %c0_31 = arith.constant 0 : index
    %c0_32 = arith.constant 0 : index
    %36 = vector.load %arg5[%c0_30, %c0_31, %c0_32] : memref<2x8x8xbf16, #tpu.memory_space<vmem>>, vector<1x8x8xbf16>
    %37 = vector.shape_cast %36 : vector<1x8x8xbf16> to vector<8x8xbf16>
    %38 = vector.shape_cast %35 : vector<8x8xbf16> to vector<1x8x8xbf16>
    tpu.vector_store %arg5[%c0_30, %c0_31, %c0_32], %38 {strides = array<i32>} : memref<2x8x8xbf16, #tpu.memory_space<vmem>>, vector<1x8x8xbf16>,
    %39 = arith.extf %35 : vector<8x8xbf16> to vector<8x8xf32>
    %40 = arith.addf %17, %39 : vector<8x8xf32>
    %41 = arith.mulf %39, %39 : vector<8x8xf32>
    %42 = arith.addf %18, %41 : vector<8x8xf32>
    %c1_33 = arith.constant 1 : index
    %c0_34 = arith.constant 0 : index
    %c0_35 = arith.constant 0 : index
    %43 = vector.load %arg7[%c1_33, %c0_34, %c0_35] : memref<2x10x8xbf16, #tpu.memory_space<vmem>>, vector<1x10x8xbf16>
    %44 = vector.shape_cast %43 : vector<1x10x8xbf16> to vector<10x8xbf16>
    %45 = vector.extract_strided_slice %44 {offsets = [0, 0], sizes = [8, 8], strides = [1, 1]} : vector<10x8xbf16> to vector<8x8xbf16>
    %c0_36 = arith.constant 0 : index
    %c0_37 = arith.constant 0 : index
    %c0_38 = arith.constant 0 : index
    %46 = vector.load %arg4[%c0_36, %c0_37, %c0_38] : memref<3x8x8xbf16, #tpu.memory_space<vmem>>, vector<1x8x8xbf16>
    %47 = vector.shape_cast %46 : vector<1x8x8xbf16> to vector<8x8xbf16>
    %cst_39 = arith.constant dense<0.000000e+00> : vector<8x8xf32>
    %48 = tpu.matmul %45, %47, %cst_39 {dimension_numbers = #tpu.dot_dimension_numbers<[1], [0], [0], [1], [0, 0, 1, 1], [], []>} : vector<8x8xbf16>, vector<8x8xbf16>, vector<8x8xf32> -> vector<8x8xf32>
    %49 = vector.extract_strided_slice %44 {offsets = [1, 0], sizes = [8, 8], strides = [1, 1]} : vector<10x8xbf16> to vector<8x8xbf16>
    %c1_40 = arith.constant 1 : index
    %c0_41 = arith.constant 0 : index
    %c0_42 = arith.constant 0 : index
    %50 = vector.load %arg4[%c1_40, %c0_41, %c0_42] : memref<3x8x8xbf16, #tpu.memory_space<vmem>>, vector<1x8x8xbf16>
    %51 = vector.shape_cast %50 : vector<1x8x8xbf16> to vector<8x8xbf16>
    %cst_43 = arith.constant dense<0.000000e+00> : vector<8x8xf32>
    %52 = tpu.matmul %49, %51, %cst_43 {dimension_numbers = #tpu.dot_dimension_numbers<[1], [0], [0], [1], [0, 0, 1, 1], [], []>} : vector<8x8xbf16>, vector<8x8xbf16>, vector<8x8xf32> -> vector<8x8xf32>
    %53 = arith.addf %48, %52 : vector<8x8xf32>
    %54 = vector.extract_strided_slice %44 {offsets = [2, 0], sizes = [8, 8], strides = [1, 1]} : vector<10x8xbf16> to vector<8x8xbf16>
    %c2_44 = arith.constant 2 : index
    %c0_45 = arith.constant 0 : index
    %c0_46 = arith.constant 0 : index
    %55 = vector.load %arg4[%c2_44, %c0_45, %c0_46] : memref<3x8x8xbf16, #tpu.memory_space<vmem>>, vector<1x8x8xbf16>
    %56 = vector.shape_cast %55 : vector<1x8x8xbf16> to vector<8x8xbf16>
    %cst_47 = arith.constant dense<0.000000e+00> : vector<8x8xf32>
    %57 = tpu.matmul %54, %56, %cst_47 {dimension_numbers = #tpu.dot_dimension_numbers<[1], [0], [0], [1], [0, 0, 1, 1], [], []>} : vector<8x8xbf16>, vector<8x8xbf16>, vector<8x8xf32> -> vector<8x8xf32>
    %58 = arith.addf %53, %57 : vector<8x8xf32>
    %59 = arith.truncf %58 : vector<8x8xf32> to vector<8x8xbf16>
    %c1_48 = arith.constant 1 : index
    %c0_49 = arith.constant 0 : index
    %c0_50 = arith.constant 0 : index
    %60 = vector.load %arg5[%c1_48, %c0_49, %c0_50] : memref<2x8x8xbf16, #tpu.memory_space<vmem>>, vector<1x8x8xbf16>
    %61 = vector.shape_cast %60 : vector<1x8x8xbf16> to vector<8x8xbf16>
    %62 = vector.shape_cast %59 : vector<8x8xbf16> to vector<1x8x8xbf16>
    tpu.vector_store %arg5[%c1_48, %c0_49, %c0_50], %62 {strides = array<i32>} : memref<2x8x8xbf16, #tpu.memory_space<vmem>>, vector<1x8x8xbf16>,
    %63 = arith.extf %59 : vector<8x8xbf16> to vector<8x8xf32>
    %64 = arith.addf %40, %63 : vector<8x8xf32>
    %65 = arith.mulf %63, %63 : vector<8x8xf32>
    %66 = arith.addf %42, %65 : vector<8x8xf32>
    %cst_51 = arith.constant dense<0.000000e+00> : vector<8xf32>
    %67 = vector.multi_reduction <add>, %64, %cst_51 [0] : vector<8x8xf32> to vector<8xf32>
    %68 = vector.shape_cast %67 : vector<8xf32> to vector<1x8xf32>
    %c0_52 = arith.constant 0 : index
    %c0_53 = arith.constant 0 : index
    %c0_54 = arith.constant 0 : index
    %69 = vector.load %arg6[%c0_52, %c0_53, %c0_54] : memref<1x2x8xf32, #tpu.memory_space<vmem>>, vector<1x1x8xf32>
    %70 = vector.shape_cast %69 : vector<1x1x8xf32> to vector<1x8xf32>
    %71 = vector.shape_cast %68 : vector<1x8xf32> to vector<1x1x8xf32>
    tpu.vector_store %arg6[%c0_52, %c0_53, %c0_54], %71 {strides = array<i32>} : memref<1x2x8xf32, #tpu.memory_space<vmem>>, vector<1x1x8xf32>,
    %cst_55 = arith.constant dense<0.000000e+00> : vector<8xf32>
    %72 = vector.multi_reduction <add>, %66, %cst_55 [0] : vector<8x8xf32> to vector<8xf32>
    %73 = vector.shape_cast %72 : vector<8xf32> to vector<1x8xf32>
    %c0_56 = arith.constant 0 : index
    %c1_57 = arith.constant 1 : index
    %c0_58 = arith.constant 0 : index
    %74 = vector.load %arg6[%c0_56, %c1_57, %c0_58] : memref<1x2x8xf32, #tpu.memory_space<vmem>>, vector<1x1x8xf32>
    %75 = vector.shape_cast %74 : vector<1x1x8xf32> to vector<1x8xf32>
    %76 = vector.shape_cast %73 : vector<1x8xf32> to vector<1x1x8xf32>
    tpu.vector_store %arg6[%c0_56, %c1_57, %c0_58], %76 {strides = array<i32>} : memref<1x2x8xf32, #tpu.memory_space<vmem>>, vector<1x1x8xf32>,
    return
  }
  func.func @transform_0(%arg0: i32) -> (i32, i32, i32) {
    %c0_i32 = arith.constant 0 : i32
    %c0_i32_0 = arith.constant 0 : i32
    %c0_i32_1 = arith.constant 0 : i32
    return %arg0, %c0_i32, %c0_i32_0 : i32, i32, i32
  }
  func.func @transform_1(%arg0: i32) -> (i32, i32) {
    %c0_i32 = arith.constant 0 : i32
    %c0_i32_0 = arith.constant 0 : i32
    %c0_i32_1 = arith.constant 0 : i32
    return %c0_i32, %c0_i32_0 : i32, i32
  }
  func.func @transform_2(%arg0: i32) -> (i32, i32) {
    %c0_i32 = arith.constant 0 : i32
    %c0_i32_0 = arith.constant 0 : i32
    %c0_i32_1 = arith.constant 0 : i32
    return %c0_i32, %c0_i32_0 : i32, i32
  }
  func.func @transform_3(%arg0: i32) -> (i32, i32, i32) {
    %c0_i32 = arith.constant 0 : i32
    %c0_i32_0 = arith.constant 0 : i32
    %c0_i32_1 = arith.constant 0 : i32
    %c0_i32_2 = arith.constant 0 : i32
    return %c0_i32, %c0_i32_0, %c0_i32_1 : i32, i32, i32
  }
  func.func @transform_4(%arg0: i32) -> (i32, i32, i32) {
    %c0_i32 = arith.constant 0 : i32
    %c0_i32_0 = arith.constant 0 : i32
    %c0_i32_1 = arith.constant 0 : i32
    return %arg0, %c0_i32, %c0_i32_0 : i32, i32, i32
  }
  func.func @transform_5(%arg0: i32) -> (i32, i32, i32) {
    %c0_i32 = arith.constant 0 : i32
    %c0_i32_0 = arith.constant 0 : i32
    %c0_i32_1 = arith.constant 0 : i32
    return %arg0, %c0_i32, %c0_i32_0 : i32, i32, i32
  }
}

module attributes {stable_mosaic.version = 11 : i64} {
  func.func @kernel(%arg0: i32, %arg1: memref<2x9x8xbf16, #tpu.memory_space<vmem>>, %arg2: memref<2x8x8xbf16, #tpu.memory_space<vmem>>, %arg3: memref<8x8xbf16, #tpu.memory_space<vmem>>, %arg4: memref<2x8x8xbf16, #tpu.memory_space<vmem>>, %arg5: memref<1x2x8xf32, #tpu.memory_space<vmem>>, %arg6: memref<2x8x8xbf16, #tpu.memory_space<vmem>>, %arg7: memref<1x2x8xf32, #tpu.memory_space<vmem>>) attributes {dimension_semantics = [#tpu.dimension_semantics<parallel>], iteration_bounds = array<i64: 1>, scalar_prefetch = 0 : i64, scratch_operands = 0 : i64, tpu.core_type = #tpu.core_type<tc>, window_params = [{transform_indices = @transform_0, window_bounds = array<i64: 2, 9, 8>}, {pipeline_mode = #tpu.pipeline_mode<synchronous>, transform_indices = @transform_1, window_bounds = array<i64: 2, 8, 8>}, {pipeline_mode = #tpu.pipeline_mode<synchronous>, transform_indices = @transform_2, window_bounds = array<i64: 8, 8>}, {transform_indices = @transform_3, window_bounds = array<i64: 2, 8, 8>}, {transform_indices = @transform_4, window_bounds = array<i64: 1, 2, 8>}, {transform_indices = @transform_5, window_bounds = array<i64: 2, 8, 8>}, {transform_indices = @transform_6, window_bounds = array<i64: 1, 2, 8>}]} {
    %cst = arith.constant 0.000000e+00 : f32
    %0 = vector.broadcast %cst : f32 to vector<8x8xf32>
    %cst_0 = arith.constant 0.000000e+00 : f32
    %1 = vector.broadcast %cst_0 : f32 to vector<8x8xf32>
    %cst_1 = arith.constant 0.000000e+00 : f32
    %2 = vector.broadcast %cst_1 : f32 to vector<8x8xf32>
    %cst_2 = arith.constant 0.000000e+00 : f32
    %3 = vector.broadcast %cst_2 : f32 to vector<8x8xf32>
    %c0 = arith.constant 0 : index
    %c0_3 = arith.constant 0 : index
    %c0_4 = arith.constant 0 : index
    %4 = vector.load %arg1[%c0, %c0_3, %c0_4] : memref<2x9x8xbf16, #tpu.memory_space<vmem>>, vector<1x9x8xbf16>
    %5 = vector.shape_cast %4 : vector<1x9x8xbf16> to vector<9x8xbf16>
    %6 = vector.extract_strided_slice %5 {offsets = [0, 0], sizes = [8, 8], strides = [1, 1]} : vector<9x8xbf16> to vector<8x8xbf16>
    %c0_5 = arith.constant 0 : index
    %c0_6 = arith.constant 0 : index
    %c0_7 = arith.constant 0 : index
    %7 = vector.load %arg2[%c0_5, %c0_6, %c0_7] : memref<2x8x8xbf16, #tpu.memory_space<vmem>>, vector<1x8x8xbf16>
    %8 = vector.shape_cast %7 : vector<1x8x8xbf16> to vector<8x8xbf16>
    %cst_8 = arith.constant dense<0.000000e+00> : vector<8x8xf32>
    %9 = tpu.matmul %6, %8, %cst_8 {dimension_numbers = #tpu.dot_dimension_numbers<[1], [0], [0], [1], [0, 0, 1, 1], [], []>} : vector<8x8xbf16>, vector<8x8xbf16>, vector<8x8xf32> -> vector<8x8xf32>
    %10 = vector.extract_strided_slice %5 {offsets = [1, 0], sizes = [8, 8], strides = [1, 1]} : vector<9x8xbf16> to vector<8x8xbf16>
    %c1 = arith.constant 1 : index
    %c0_9 = arith.constant 0 : index
    %c0_10 = arith.constant 0 : index
    %11 = vector.load %arg2[%c1, %c0_9, %c0_10] : memref<2x8x8xbf16, #tpu.memory_space<vmem>>, vector<1x8x8xbf16>
    %12 = vector.shape_cast %11 : vector<1x8x8xbf16> to vector<8x8xbf16>
    %cst_11 = arith.constant dense<0.000000e+00> : vector<8x8xf32>
    %13 = tpu.matmul %10, %12, %cst_11 {dimension_numbers = #tpu.dot_dimension_numbers<[1], [0], [0], [1], [0, 0, 1, 1], [], []>} : vector<8x8xbf16>, vector<8x8xbf16>, vector<8x8xf32> -> vector<8x8xf32>
    %14 = arith.addf %9, %13 : vector<8x8xf32>
    %15 = arith.truncf %14 : vector<8x8xf32> to vector<8x8xbf16>
    %c0_12 = arith.constant 0 : index
    %c0_13 = arith.constant 0 : index
    %c0_14 = arith.constant 0 : index
    %16 = vector.load %arg4[%c0_12, %c0_13, %c0_14] : memref<2x8x8xbf16, #tpu.memory_space<vmem>>, vector<1x8x8xbf16>
    %17 = vector.shape_cast %16 : vector<1x8x8xbf16> to vector<8x8xbf16>
    %18 = vector.shape_cast %15 : vector<8x8xbf16> to vector<1x8x8xbf16>
    tpu.vector_store %arg4[%c0_12, %c0_13, %c0_14], %18 {strides = array<i32>} : memref<2x8x8xbf16, #tpu.memory_space<vmem>>, vector<1x8x8xbf16>,
    %19 = arith.extf %15 : vector<8x8xbf16> to vector<8x8xf32>
    %20 = arith.addf %0, %19 : vector<8x8xf32>
    %21 = arith.mulf %19, %19 : vector<8x8xf32>
    %22 = arith.addf %1, %21 : vector<8x8xf32>
    %23 = vector.extract_strided_slice %5 {offsets = [0, 0], sizes = [8, 8], strides = [1, 1]} : vector<9x8xbf16> to vector<8x8xbf16>
    %c0_15 = arith.constant 0 : index
    %c0_16 = arith.constant 0 : index
    %24 = vector.load %arg3[%c0_15, %c0_16] : memref<8x8xbf16, #tpu.memory_space<vmem>>, vector<8x8xbf16>
    %cst_17 = arith.constant dense<0.000000e+00> : vector<8x8xf32>
    %25 = tpu.matmul %23, %24, %cst_17 {dimension_numbers = #tpu.dot_dimension_numbers<[1], [0], [0], [1], [0, 0, 1, 1], [], []>} : vector<8x8xbf16>, vector<8x8xbf16>, vector<8x8xf32> -> vector<8x8xf32>
    %26 = arith.truncf %25 : vector<8x8xf32> to vector<8x8xbf16>
    %c0_18 = arith.constant 0 : index
    %c0_19 = arith.constant 0 : index
    %c0_20 = arith.constant 0 : index
    %27 = vector.load %arg6[%c0_18, %c0_19, %c0_20] : memref<2x8x8xbf16, #tpu.memory_space<vmem>>, vector<1x8x8xbf16>
    %28 = vector.shape_cast %27 : vector<1x8x8xbf16> to vector<8x8xbf16>
    %29 = vector.shape_cast %26 : vector<8x8xbf16> to vector<1x8x8xbf16>
    tpu.vector_store %arg6[%c0_18, %c0_19, %c0_20], %29 {strides = array<i32>} : memref<2x8x8xbf16, #tpu.memory_space<vmem>>, vector<1x8x8xbf16>,
    %30 = arith.extf %26 : vector<8x8xbf16> to vector<8x8xf32>
    %31 = arith.addf %2, %30 : vector<8x8xf32>
    %32 = arith.mulf %30, %30 : vector<8x8xf32>
    %33 = arith.addf %3, %32 : vector<8x8xf32>
    %c1_21 = arith.constant 1 : index
    %c0_22 = arith.constant 0 : index
    %c0_23 = arith.constant 0 : index
    %34 = vector.load %arg1[%c1_21, %c0_22, %c0_23] : memref<2x9x8xbf16, #tpu.memory_space<vmem>>, vector<1x9x8xbf16>
    %35 = vector.shape_cast %34 : vector<1x9x8xbf16> to vector<9x8xbf16>
    %36 = vector.extract_strided_slice %35 {offsets = [0, 0], sizes = [8, 8], strides = [1, 1]} : vector<9x8xbf16> to vector<8x8xbf16>
    %c0_24 = arith.constant 0 : index
    %c0_25 = arith.constant 0 : index
    %c0_26 = arith.constant 0 : index
    %37 = vector.load %arg2[%c0_24, %c0_25, %c0_26] : memref<2x8x8xbf16, #tpu.memory_space<vmem>>, vector<1x8x8xbf16>
    %38 = vector.shape_cast %37 : vector<1x8x8xbf16> to vector<8x8xbf16>
    %cst_27 = arith.constant dense<0.000000e+00> : vector<8x8xf32>
    %39 = tpu.matmul %36, %38, %cst_27 {dimension_numbers = #tpu.dot_dimension_numbers<[1], [0], [0], [1], [0, 0, 1, 1], [], []>} : vector<8x8xbf16>, vector<8x8xbf16>, vector<8x8xf32> -> vector<8x8xf32>
    %40 = vector.extract_strided_slice %35 {offsets = [1, 0], sizes = [8, 8], strides = [1, 1]} : vector<9x8xbf16> to vector<8x8xbf16>
    %c1_28 = arith.constant 1 : index
    %c0_29 = arith.constant 0 : index
    %c0_30 = arith.constant 0 : index
    %41 = vector.load %arg2[%c1_28, %c0_29, %c0_30] : memref<2x8x8xbf16, #tpu.memory_space<vmem>>, vector<1x8x8xbf16>
    %42 = vector.shape_cast %41 : vector<1x8x8xbf16> to vector<8x8xbf16>
    %cst_31 = arith.constant dense<0.000000e+00> : vector<8x8xf32>
    %43 = tpu.matmul %40, %42, %cst_31 {dimension_numbers = #tpu.dot_dimension_numbers<[1], [0], [0], [1], [0, 0, 1, 1], [], []>} : vector<8x8xbf16>, vector<8x8xbf16>, vector<8x8xf32> -> vector<8x8xf32>
    %44 = arith.addf %39, %43 : vector<8x8xf32>
    %45 = arith.truncf %44 : vector<8x8xf32> to vector<8x8xbf16>
    %c1_32 = arith.constant 1 : index
    %c0_33 = arith.constant 0 : index
    %c0_34 = arith.constant 0 : index
    %46 = vector.load %arg4[%c1_32, %c0_33, %c0_34] : memref<2x8x8xbf16, #tpu.memory_space<vmem>>, vector<1x8x8xbf16>
    %47 = vector.shape_cast %46 : vector<1x8x8xbf16> to vector<8x8xbf16>
    %48 = vector.shape_cast %45 : vector<8x8xbf16> to vector<1x8x8xbf16>
    tpu.vector_store %arg4[%c1_32, %c0_33, %c0_34], %48 {strides = array<i32>} : memref<2x8x8xbf16, #tpu.memory_space<vmem>>, vector<1x8x8xbf16>,
    %49 = arith.extf %45 : vector<8x8xbf16> to vector<8x8xf32>
    %50 = arith.addf %20, %49 : vector<8x8xf32>
    %51 = arith.mulf %49, %49 : vector<8x8xf32>
    %52 = arith.addf %22, %51 : vector<8x8xf32>
    %53 = vector.extract_strided_slice %35 {offsets = [0, 0], sizes = [8, 8], strides = [1, 1]} : vector<9x8xbf16> to vector<8x8xbf16>
    %c0_35 = arith.constant 0 : index
    %c0_36 = arith.constant 0 : index
    %54 = vector.load %arg3[%c0_35, %c0_36] : memref<8x8xbf16, #tpu.memory_space<vmem>>, vector<8x8xbf16>
    %cst_37 = arith.constant dense<0.000000e+00> : vector<8x8xf32>
    %55 = tpu.matmul %53, %54, %cst_37 {dimension_numbers = #tpu.dot_dimension_numbers<[1], [0], [0], [1], [0, 0, 1, 1], [], []>} : vector<8x8xbf16>, vector<8x8xbf16>, vector<8x8xf32> -> vector<8x8xf32>
    %56 = arith.truncf %55 : vector<8x8xf32> to vector<8x8xbf16>
    %c1_38 = arith.constant 1 : index
    %c0_39 = arith.constant 0 : index
    %c0_40 = arith.constant 0 : index
    %57 = vector.load %arg6[%c1_38, %c0_39, %c0_40] : memref<2x8x8xbf16, #tpu.memory_space<vmem>>, vector<1x8x8xbf16>
    %58 = vector.shape_cast %57 : vector<1x8x8xbf16> to vector<8x8xbf16>
    %59 = vector.shape_cast %56 : vector<8x8xbf16> to vector<1x8x8xbf16>
    tpu.vector_store %arg6[%c1_38, %c0_39, %c0_40], %59 {strides = array<i32>} : memref<2x8x8xbf16, #tpu.memory_space<vmem>>, vector<1x8x8xbf16>,
    %60 = arith.extf %56 : vector<8x8xbf16> to vector<8x8xf32>
    %61 = arith.addf %31, %60 : vector<8x8xf32>
    %62 = arith.mulf %60, %60 : vector<8x8xf32>
    %63 = arith.addf %33, %62 : vector<8x8xf32>
    %cst_41 = arith.constant dense<0.000000e+00> : vector<8xf32>
    %64 = vector.multi_reduction <add>, %50, %cst_41 [0] : vector<8x8xf32> to vector<8xf32>
    %65 = vector.shape_cast %64 : vector<8xf32> to vector<1x8xf32>
    %c0_42 = arith.constant 0 : index
    %c0_43 = arith.constant 0 : index
    %c0_44 = arith.constant 0 : index
    %66 = vector.load %arg5[%c0_42, %c0_43, %c0_44] : memref<1x2x8xf32, #tpu.memory_space<vmem>>, vector<1x1x8xf32>
    %67 = vector.shape_cast %66 : vector<1x1x8xf32> to vector<1x8xf32>
    %68 = vector.shape_cast %65 : vector<1x8xf32> to vector<1x1x8xf32>
    tpu.vector_store %arg5[%c0_42, %c0_43, %c0_44], %68 {strides = array<i32>} : memref<1x2x8xf32, #tpu.memory_space<vmem>>, vector<1x1x8xf32>,
    %cst_45 = arith.constant dense<0.000000e+00> : vector<8xf32>
    %69 = vector.multi_reduction <add>, %52, %cst_45 [0] : vector<8x8xf32> to vector<8xf32>
    %70 = vector.shape_cast %69 : vector<8xf32> to vector<1x8xf32>
    %c0_46 = arith.constant 0 : index
    %c1_47 = arith.constant 1 : index
    %c0_48 = arith.constant 0 : index
    %71 = vector.load %arg5[%c0_46, %c1_47, %c0_48] : memref<1x2x8xf32, #tpu.memory_space<vmem>>, vector<1x1x8xf32>
    %72 = vector.shape_cast %71 : vector<1x1x8xf32> to vector<1x8xf32>
    %73 = vector.shape_cast %70 : vector<1x8xf32> to vector<1x1x8xf32>
    tpu.vector_store %arg5[%c0_46, %c1_47, %c0_48], %73 {strides = array<i32>} : memref<1x2x8xf32, #tpu.memory_space<vmem>>, vector<1x1x8xf32>,
    %cst_49 = arith.constant dense<0.000000e+00> : vector<8xf32>
    %74 = vector.multi_reduction <add>, %61, %cst_49 [0] : vector<8x8xf32> to vector<8xf32>
    %75 = vector.shape_cast %74 : vector<8xf32> to vector<1x8xf32>
    %c0_50 = arith.constant 0 : index
    %c0_51 = arith.constant 0 : index
    %c0_52 = arith.constant 0 : index
    %76 = vector.load %arg7[%c0_50, %c0_51, %c0_52] : memref<1x2x8xf32, #tpu.memory_space<vmem>>, vector<1x1x8xf32>
    %77 = vector.shape_cast %76 : vector<1x1x8xf32> to vector<1x8xf32>
    %78 = vector.shape_cast %75 : vector<1x8xf32> to vector<1x1x8xf32>
    tpu.vector_store %arg7[%c0_50, %c0_51, %c0_52], %78 {strides = array<i32>} : memref<1x2x8xf32, #tpu.memory_space<vmem>>, vector<1x1x8xf32>,
    %cst_53 = arith.constant dense<0.000000e+00> : vector<8xf32>
    %79 = vector.multi_reduction <add>, %63, %cst_53 [0] : vector<8x8xf32> to vector<8xf32>
    %80 = vector.shape_cast %79 : vector<8xf32> to vector<1x8xf32>
    %c0_54 = arith.constant 0 : index
    %c1_55 = arith.constant 1 : index
    %c0_56 = arith.constant 0 : index
    %81 = vector.load %arg7[%c0_54, %c1_55, %c0_56] : memref<1x2x8xf32, #tpu.memory_space<vmem>>, vector<1x1x8xf32>
    %82 = vector.shape_cast %81 : vector<1x1x8xf32> to vector<1x8xf32>
    %83 = vector.shape_cast %80 : vector<1x8xf32> to vector<1x1x8xf32>
    tpu.vector_store %arg7[%c0_54, %c1_55, %c0_56], %83 {strides = array<i32>} : memref<1x2x8xf32, #tpu.memory_space<vmem>>, vector<1x1x8xf32>,
    return
  }
  func.func @transform_0(%arg0: i32) -> (i32, i32, i32) {
    %c0_i32 = arith.constant 0 : i32
    %c0_i32_0 = arith.constant 0 : i32
    %c0_i32_1 = arith.constant 0 : i32
    return %arg0, %c0_i32, %c0_i32_0 : i32, i32, i32
  }
  func.func @transform_1(%arg0: i32) -> (i32, i32, i32) {
    %c0_i32 = arith.constant 0 : i32
    %c0_i32_0 = arith.constant 0 : i32
    %c0_i32_1 = arith.constant 0 : i32
    %c0_i32_2 = arith.constant 0 : i32
    return %c0_i32, %c0_i32_0, %c0_i32_1 : i32, i32, i32
  }
  func.func @transform_2(%arg0: i32) -> (i32, i32) {
    %c0_i32 = arith.constant 0 : i32
    %c0_i32_0 = arith.constant 0 : i32
    %c0_i32_1 = arith.constant 0 : i32
    return %c0_i32, %c0_i32_0 : i32, i32
  }
  func.func @transform_3(%arg0: i32) -> (i32, i32, i32) {
    %c0_i32 = arith.constant 0 : i32
    %c0_i32_0 = arith.constant 0 : i32
    %c0_i32_1 = arith.constant 0 : i32
    return %arg0, %c0_i32, %c0_i32_0 : i32, i32, i32
  }
  func.func @transform_4(%arg0: i32) -> (i32, i32, i32) {
    %c0_i32 = arith.constant 0 : i32
    %c0_i32_0 = arith.constant 0 : i32
    %c0_i32_1 = arith.constant 0 : i32
    return %arg0, %c0_i32, %c0_i32_0 : i32, i32, i32
  }
  func.func @transform_5(%arg0: i32) -> (i32, i32, i32) {
    %c0_i32 = arith.constant 0 : i32
    %c0_i32_0 = arith.constant 0 : i32
    %c0_i32_1 = arith.constant 0 : i32
    return %arg0, %c0_i32, %c0_i32_0 : i32, i32, i32
  }
  func.func @transform_6(%arg0: i32) -> (i32, i32, i32) {
    %c0_i32 = arith.constant 0 : i32
    %c0_i32_0 = arith.constant 0 : i32
    %c0_i32_1 = arith.constant 0 : i32
    return %arg0, %c0_i32, %c0_i32_0 : i32, i32, i32
  }
}

</mosaic_0001>

<llo_original>
// kernel: basic_block_forward.5
$region0: #{basic_block_forward.5}
  #allocation0 [shape = 'u32[]', space=smem, size = 0x4, offset = 0x4, fixed_abs, tag = 'smem constant byte address 0x4 - core index']
  #allocation1 [shape = 'u32[144,128]{1,0:T(1,128)}', space=vmem, size = 0x12000, scoped, tag = 'internal scratch']
  %s0 = inlined_call_operand.vmem [shape: bf16[2,8,8], index: 0, kind: input, shape index: {}]
  %s1 = inlined_call_operand.vmem [shape: f32[1,8], index: 1, kind: input, shape index: {}]
  %s2 = inlined_call_operand.vmem [shape: f32[1,8], index: 2, kind: input, shape index: {}]
  %s3 = inlined_call_operand.vmem [shape: bf16[2,8,8], index: 3, kind: input, shape index: {}]
  %s4 = inlined_call_operand.vmem [shape: f32[1,8], index: 4, kind: input, shape index: {}]
  %s5 = inlined_call_operand.vmem [shape: f32[1,8], index: 5, kind: input, shape index: {}]
  %s6 = inlined_call_operand.vmem [shape: bf16[2,8,8], index: 6, kind: output, shape index: {}]
  %s7 = sld [smem:[#allocation0]]
  $region34: #{basic_block_forward.5} parent=0
    _
  %s9 = ssub.s32 1, %s7
  %s10 = scalar_select 0, %s9, %s7
  // Predicated region
  $region2: #{basic_block_forward.5} parent=0 // pred_check
    _
  $region3: #{basic_block_forward.5} parent=0 // pred_check_branch
    %12 = sbr.rel (0) target = $region5
  $region4: #{basic_block_forward.5} parent=0 // pred_region
    _
  $region5: #{basic_block_forward.5} parent=0 // pred_fallthru
    _
  // Predicated region
  $region6: #{basic_block_forward.5} parent=0 // pred_check
    _
  $region7: #{basic_block_forward.5} parent=0 // pred_check_branch
    %14 = sbr.rel (0) target = $region9
  $region8: #{basic_block_forward.5} parent=0 // pred_region
    _
  $region9: #{basic_block_forward.5} parent=0 // pred_fallthru
    _
  // Predicated region
  $region10: #{basic_block_forward.5} parent=0 // pred_check
    _
  $region11: #{basic_block_forward.5} parent=0 // pred_check_branch
    %16 = sbr.rel (0) target = $region13
  $region12: #{basic_block_forward.5} parent=0 // pred_region
    _
  $region13: #{basic_block_forward.5} parent=0 // pred_fallthru
    _
  // Predicated region
  $region14: #{basic_block_forward.5} parent=0 // pred_check
    _
  $region15: #{basic_block_forward.5} parent=0 // pred_check_branch
    %18 = sbr.rel (0) target = $region17
  $region16: #{basic_block_forward.5} parent=0 // pred_region
    _
  $region17: #{basic_block_forward.5} parent=0 // pred_fallthru
    _
  // Predicated region
  $region18: #{basic_block_forward.5} parent=0 // pred_check
    _
  $region19: #{basic_block_forward.5} parent=0 // pred_check_branch
    %20 = sbr.rel (0) target = $region21
  $region20: #{basic_block_forward.5} parent=0 // pred_region
    _
  $region21: #{basic_block_forward.5} parent=0 // pred_fallthru
    _
  // Predicated region
  $region22: #{basic_block_forward.5} parent=0 // pred_check
    _
  $region23: #{basic_block_forward.5} parent=0 // pred_check_branch
    %22 = sbr.rel (0) target = $region25
  $region24: #{basic_block_forward.5} parent=0 // pred_region
    _
  $region25: #{basic_block_forward.5} parent=0 // pred_fallthru
    _
  %v23 = vld [vmem:[%s3] sm:$0xf]
  %v24 = vld [vmem:[%s3 + $0x4] sm:$0xf]
  %v25 = vunpack.c.l.bf16 %v23
  %v26 = vunpack.c.l.bf16 %v24
  %v27 = vld [vmem:[%s4] sm:$0x1]
  %v29 = vlaneseq
  %v30 = vshrl.u32 %v29, 7
  %v31 = vsub.s32 0, %v30
  %v32 = vrot.slane %v27, %v31
  %v34 = vmul.f32 %v25, %v32
  %v35 = vmul.f32 %v26, %v32
  %v36 = vld [vmem:[%s5] sm:$0x1]
  %v38 = vlaneseq
  %v39 = vshrl.u32 %v38, 7
  %v40 = vsub.s32 0, %v39
  %v41 = vrot.slane %v36, %v40
  %v43 = vadd.f32 %v34, %v41
  %v44 = vadd.f32 %v35, %v41
  %v45 = vld [vmem:[%s0] sm:$0xf]
  %v46 = vld [vmem:[%s0 + $0x4] sm:$0xf]
  %v47 = vunpack.c.l.bf16 %v45
  %v48 = vunpack.c.l.bf16 %v46
  %v49 = vld [vmem:[%s1] sm:$0x1]
  %v51 = vlaneseq
  %v52 = vshrl.u32 %v51, 7
  %v53 = vsub.s32 0, %v52
  %v54 = vrot.slane %v49, %v53
  %v56 = vmul.f32 %v47, %v54
  %v57 = vmul.f32 %v48, %v54
  %v58 = vld [vmem:[%s2] sm:$0x1]
  %v60 = vlaneseq
  %v61 = vshrl.u32 %v60, 7
  %v62 = vsub.s32 0, %v61
  %v63 = vrot.slane %v58, %v62
  %v65 = vadd.f32 %v56, %v63
  %v66 = vadd.f32 %v57, %v63
  %v67 = vadd.f32 %v65, %v43
  %v68 = vadd.f32 %v66, %v44
  %v69 = vmax.f32 %v67, 0.0
  %v70 = vmax.f32 %v68, 0.0
  %v71 = vpack.c.bf16 %v69, %v69
  %v72 = vpack.c.bf16 %v70, %v70
  %vm73 = vcmask 60416
  %74 = vst.msk [vmem:[%s6] sm:$0xf] %vm73, %v71
  %75 = vst.msk [vmem:[%s6 + $0x4] sm:$0xf] %vm73, %v72
  // Predicated region
  $region26: #{basic_block_forward.5} parent=0 // pred_check
    _
  $region27: #{basic_block_forward.5} parent=0 // pred_check_branch
    %77 = sbr.rel (0) target = $region29
  $region28: #{basic_block_forward.5} parent=0 // pred_region
    _
  $region29: #{basic_block_forward.5} parent=0 // pred_fallthru
    _
  // Predicated region
  $region30: #{basic_block_forward.5} parent=0 // pred_check
    _
  $region31: #{basic_block_forward.5} parent=0 // pred_check_branch
    %79 = sbr.rel (0) target = $region33
  $region32: #{basic_block_forward.5} parent=0 // pred_region
    _
  $region33: #{basic_block_forward.5} parent=0 // pred_fallthru
    _

// kernel: basic_block_forward.3
$region0: #{basic_block_forward.3}
  #allocation0 [shape = 'u32[]', space=smem, size = 0x4, offset = 0x4, fixed_abs, tag = 'smem constant byte address 0x4 - core index']
  #allocation1 [shape = 'u32[144,128]{1,0:T(1,128)}', space=vmem, size = 0x12000, scoped, tag = 'internal scratch']
  %s0 = inlined_call_operand.vmem [shape: bf16[2,9,8], index: 0, kind: input, shape index: {}]
  %s1 = inlined_call_operand.vmem [shape: bf16[2,8,8], index: 1, kind: input, shape index: {}]
  %s2 = inlined_call_operand.vmem [shape: bf16[8,8], index: 2, kind: input, shape index: {}]
  %s3 = inlined_call_operand.vmem [shape: bf16[2,8,8], index: 3, kind: output, shape index: {0}]
  %s4 = inlined_call_operand.vmem [shape: f32[1,2,8], index: 4, kind: output, shape index: {1}]
  %s5 = inlined_call_operand.vmem [shape: bf16[2,8,8], index: 5, kind: output, shape index: {2}]
  %s6 = inlined_call_operand.vmem [shape: f32[1,2,8], index: 6, kind: output, shape index: {3}]
  %7 = xla_tuple %s3, %s4, %s5, %s6
  %s8 = sld [smem:[#allocation0]]
  $region46: #{basic_block_forward.3} parent=0
    _
  %s10 = ssub.s32 1, %s8
  %s11 = scalar_select 0, %s10, %s8
  // Predicated region
  $region2: #{basic_block_forward.3} parent=0 // pred_check
    _
  $region3: #{basic_block_forward.3} parent=0 // pred_check_branch
    %13 = sbr.rel (0) target = $region5
  $region4: #{basic_block_forward.3} parent=0 // pred_region
    _
  $region5: #{basic_block_forward.3} parent=0 // pred_fallthru
    _
  // Predicated region
  $region6: #{basic_block_forward.3} parent=0 // pred_check
    _
  $region7: #{basic_block_forward.3} parent=0 // pred_check_branch
    %15 = sbr.rel (0) target = $region9
  $region8: #{basic_block_forward.3} parent=0 // pred_region
    _
  $region9: #{basic_block_forward.3} parent=0 // pred_fallthru
    _
  // Predicated region
  $region10: #{basic_block_forward.3} parent=0 // pred_check
    _
  $region11: #{basic_block_forward.3} parent=0 // pred_check_branch
    %17 = sbr.rel (0) target = $region13
  $region12: #{basic_block_forward.3} parent=0 // pred_region
    _
  $region13: #{basic_block_forward.3} parent=0 // pred_fallthru
    _
  %v19 = vld [vmem:[%s0] sm:$0xf]
  %v20 = vld [vmem:[%s0 + $0x4] sm:$0x1]
  %v21 = vld [vmem:[%s1] sm:$0xf]
  %s22 = scalar_lea.vmem %s1, 4
  %v23 = vld [vmem:[%s22] sm:$0xf]
  %v26 = vunpack.c.l.b16 %v19
  %v27 = vunpack.c.l.b16 %v20
  %v28 = vpack.c.b16 %v27, %v26
  %v30 = vshrl.u32 %v28, 16
  %v32 = vshll.u32 %v28, 16
  %v34 = vrot.slane %v32, 1
  %v35 = vor.u32 %v30, %v34
  %vm36 = vcmask 64512
  %v38 = vsel %vm36, %v35, 0
  %vm40 = vcmask 1043456
  %v42 = vsel %vm40, %v23, 0
  %44 = vmatprep.subr.bf16.mxu0 0
  %45 = vmatpush1.bf16.msra.mxu0 %v42
  %46 = vmatprep.subr.bf16.mxu0 0
  %47 = vmatpush1.bf16.msra.mxu0 0
  %48 = vmatprep.subr.bf16.mxu0 0
  %49 = vmatpush1.bf16.msra.mxu0 0
  %50 = vmatprep.subr.bf16.mxu0 0
  %51 = vmatpush1.bf16.msra.mxu0 0
  %52 = vmatprep.subr.bf16.mxu0 0
  %53 = vmatpush1.bf16.msra.mxu0 0
  %54 = vmatprep.subr.bf16.mxu0 0
  %55 = vmatpush1.bf16.msra.mxu0 0
  %56 = vmatprep.subr.bf16.mxu0 0
  %57 = vmatpush1.bf16.msra.mxu0 0
  %58 = vmatprep.subr.bf16.mxu0 0
  %59 = vmatpush1.bf16.msra.mxu0 0
  %60 = vmatprep.subr.bf16.mxu0 0
  %61 = vmatpush1.bf16.msra.mxu0 0
  %62 = vmatprep.subr.bf16.mxu0 0
  %63 = vmatpush1.bf16.msra.mxu0 0
  %64 = vmatprep.subr.bf16.mxu0 0
  %65 = vmatpush1.bf16.msra.mxu0 0
  %66 = vmatprep.subr.bf16.mxu0 0
  %67 = vmatpush1.bf16.msra.mxu0 0
  %68 = vmatprep.subr.bf16.mxu0 0
  %69 = vmatpush1.bf16.msra.mxu0 0
  %70 = vmatprep.subr.bf16.mxu0 0
  %71 = vmatpush1.bf16.msra.mxu0 0
  %72 = vmatprep.subr.bf16.mxu0 0
  %73 = vmatpush1.bf16.msra.mxu0 0
  %74 = vmatprep.subr.bf16.mxu0 0
  %75 = vmatpush1.bf16.msra.mxu0 0
  %76 = vmatprep.mubr.bf16.mxu0 0
  %77 = vmatmul.mubr.bf16.gmra.mrb[0].mxu0 %v38
  %v78 = vpop.f32.mrb[0].mxu0
  %v79 = vadd.f32 0.0, %v78
  %v80 = vpop.f32.mrb[0].mxu0
  %v81 = vpop.f32.mrb[0].mxu0
  %v82 = vpop.f32.mrb[0].mxu0
  %83 = vdwg.mxu0
  %v85 = vsel %vm36, %v19, 0
  %v88 = vsel %vm40, %v21, 0
  %90 = vmatprep.subr.bf16.mxu0 0
  %91 = vmatpush1.bf16.msra.mxu0 %v88
  %92 = vmatprep.subr.bf16.mxu0 0
  %93 = vmatpush1.bf16.msra.mxu0 0
  %94 = vmatprep.subr.bf16.mxu0 0
  %95 = vmatpush1.bf16.msra.mxu0 0
  %96 = vmatprep.subr.bf16.mxu0 0
  %97 = vmatpush1.bf16.msra.mxu0 0
  %98 = vmatprep.subr.bf16.mxu0 0
  %99 = vmatpush1.bf16.msra.mxu0 0
  %100 = vmatprep.subr.bf16.mxu0 0
  %101 = vmatpush1.bf16.msra.mxu0 0
  %102 = vmatprep.subr.bf16.mxu0 0
  %103 = vmatpush1.bf16.msra.mxu0 0
  %104 = vmatprep.subr.bf16.mxu0 0
  %105 = vmatpush1.bf16.msra.mxu0 0
  %106 = vmatprep.subr.bf16.mxu0 0
  %107 = vmatpush1.bf16.msra.mxu0 0
  %108 = vmatprep.subr.bf16.mxu0 0
  %109 = vmatpush1.bf16.msra.mxu0 0
  %110 = vmatprep.subr.bf16.mxu0 0
  %111 = vmatpush1.bf16.msra.mxu0 0
  %112 = vmatprep.subr.bf16.mxu0 0
  %113 = vmatpush1.bf16.msra.mxu0 0
  %114 = vmatprep.subr.bf16.mxu0 0
  %115 = vmatpush1.bf16.msra.mxu0 0
  %116 = vmatprep.subr.bf16.mxu0 0
  %117 = vmatpush1.bf16.msra.mxu0 0
  %118 = vmatprep.subr.bf16.mxu0 0
  %119 = vmatpush1.bf16.msra.mxu0 0
  %120 = vmatprep.subr.bf16.mxu0 0
  %121 = vmatpush1.bf16.msra.mxu0 0
  %122 = vmatprep.mubr.bf16.mxu0 0
  %123 = vmatmul.mubr.bf16.gmra.mrb[0].mxu0 %v85
  %v124 = vpop.f32.mrb[0].mxu0
  %v125 = vadd.f32 %v79, %v124
  %v126 = vpop.f32.mrb[0].mxu0
  %v127 = vpop.f32.mrb[0].mxu0
  %v128 = vpop.f32.mrb[0].mxu0
  %129 = vdwg.mxu0
  %v130 = vpack.c.bf16 %v125, %v125
  %vm131 = vcmask 60416
  %132 = vst.msk [vmem:[%s3] sm:$0xf] %vm131, %v130
  %v133 = vunpack.c.l.bf16 %v130
  %v134 = vadd.f32 %v133, 0.0
  %v135 = vmul.f32 %v133, %v133
  %v136 = vadd.f32 %v135, 0.0
  %v137 = vld [vmem:[%s2] sm:$0xf]
  %v139 = vsel %vm40, %v137, 0
  %141 = vmatprep.subr.bf16.mxu0 0
  %142 = vmatpush1.bf16.msra.mxu0 %v139
  %143 = vmatprep.subr.bf16.mxu0 0
  %144 = vmatpush1.bf16.msra.mxu0 0
  %145 = vmatprep.subr.bf16.mxu0 0
  %146 = vmatpush1.bf16.msra.mxu0 0
  %147 = vmatprep.subr.bf16.mxu0 0
  %148 = vmatpush1.bf16.msra.mxu0 0
  %149 = vmatprep.subr.bf16.mxu0 0
  %150 = vmatpush1.bf16.msra.mxu0 0
  %151 = vmatprep.subr.bf16.mxu0 0
  %152 = vmatpush1.bf16.msra.mxu0 0
  %153 = vmatprep.subr.bf16.mxu0 0
  %154 = vmatpush1.bf16.msra.mxu0 0
  %155 = vmatprep.subr.bf16.mxu0 0
  %156 = vmatpush1.bf16.msra.mxu0 0
  %157 = vmatprep.subr.bf16.mxu0 0
  %158 = vmatpush1.bf16.msra.mxu0 0
  %159 = vmatprep.subr.bf16.mxu0 0
  %160 = vmatpush1.bf16.msra.mxu0 0
  %161 = vmatprep.subr.bf16.mxu0 0
  %162 = vmatpush1.bf16.msra.mxu0 0
  %163 = vmatprep.subr.bf16.mxu0 0
  %164 = vmatpush1.bf16.msra.mxu0 0
  %165 = vmatprep.subr.bf16.mxu0 0
  %166 = vmatpush1.bf16.msra.mxu0 0
  %167 = vmatprep.subr.bf16.mxu0 0
  %168 = vmatpush1.bf16.msra.mxu0 0
  %169 = vmatprep.subr.bf16.mxu0 0
  %170 = vmatpush1.bf16.msra.mxu0 0
  %171 = vmatprep.subr.bf16.mxu0 0
  %172 = vmatpush1.bf16.msra.mxu0 0
  %173 = vmatprep.mubr.bf16.mxu0 0
  %174 = vmatmul.mubr.bf16.gmra.mrb[0].mxu0 %v85
  %v175 = vpop.f32.mrb[0].mxu0
  %v176 = vadd.f32 0.0, %v175
  %v177 = vpop.f32.mrb[0].mxu0
  %v178 = vpop.f32.mrb[0].mxu0
  %v179 = vpop.f32.mrb[0].mxu0
  %180 = vdwg.mxu0
  %v181 = vpack.c.bf16 %v176, %v176
  %182 = vst.msk [vmem:[%s5] sm:$0xf] %vm131, %v181
  %v183 = vunpack.c.l.bf16 %v181
  %v184 = vadd.f32 %v183, 0.0
  %v185 = vmul.f32 %v183, %v183
  %v186 = vadd.f32 %v185, 0.0
  %s187 = scalar_lea.vmem %s0, 8
  %v188 = vld [vmem:[%s187] sm:$0xf]
  %v189 = vld [vmem:[%s187 + $0x4] sm:$0x1]
  %v190 = vld [vmem:[%s1] sm:$0xf]
  %v191 = vld [vmem:[%s22] sm:$0xf]
  %v194 = vunpack.c.l.b16 %v188
  %v195 = vunpack.c.l.b16 %v189
  %v196 = vpack.c.b16 %v195, %v194
  %v198 = vshrl.u32 %v196, 16
  %v200 = vshll.u32 %v196, 16
  %v202 = vrot.slane %v200, 1
  %v203 = vor.u32 %v198, %v202
  %v205 = vsel %vm36, %v203, 0
  %v208 = vsel %vm40, %v191, 0
  %210 = vmatprep.subr.bf16.mxu0 0
  %211 = vmatpush1.bf16.msra.mxu0 %v208
  %212 = vmatprep.subr.bf16.mxu0 0
  %213 = vmatpush1.bf16.msra.mxu0 0
  %214 = vmatprep.subr.bf16.mxu0 0
  %215 = vmatpush1.bf16.msra.mxu0 0
  %216 = vmatprep.subr.bf16.mxu0 0
  %217 = vmatpush1.bf16.msra.mxu0 0
  %218 = vmatprep.subr.bf16.mxu0 0
  %219 = vmatpush1.bf16.msra.mxu0 0
  %220 = vmatprep.subr.bf16.mxu0 0
  %221 = vmatpush1.bf16.msra.mxu0 0
  %222 = vmatprep.subr.bf16.mxu0 0
  %223 = vmatpush1.bf16.msra.mxu0 0
  %224 = vmatprep.subr.bf16.mxu0 0
  %225 = vmatpush1.bf16.msra.mxu0 0
  %226 = vmatprep.subr.bf16.mxu0 0
  %227 = vmatpush1.bf16.msra.mxu0 0
  %228 = vmatprep.subr.bf16.mxu0 0
  %229 = vmatpush1.bf16.msra.mxu0 0
  %230 = vmatprep.subr.bf16.mxu0 0
  %231 = vmatpush1.bf16.msra.mxu0 0
  %232 = vmatprep.subr.bf16.mxu0 0
  %233 = vmatpush1.bf16.msra.mxu0 0
  %234 = vmatprep.subr.bf16.mxu0 0
  %235 = vmatpush1.bf16.msra.mxu0 0
  %236 = vmatprep.subr.bf16.mxu0 0
  %237 = vmatpush1.bf16.msra.mxu0 0
  %238 = vmatprep.subr.bf16.mxu0 0
  %239 = vmatpush1.bf16.msra.mxu0 0
  %240 = vmatprep.subr.bf16.mxu0 0
  %241 = vmatpush1.bf16.msra.mxu0 0
  %242 = vmatprep.mubr.bf16.mxu0 0
  %243 = vmatmul.mubr.bf16.gmra.mrb[0].mxu0 %v205
  %v244 = vpop.f32.mrb[0].mxu0
  %v245 = vadd.f32 0.0, %v244
  %v246 = vpop.f32.mrb[0].mxu0
  %v247 = vpop.f32.mrb[0].mxu0
  %v248 = vpop.f32.mrb[0].mxu0
  %249 = vdwg.mxu0
  %v251 = vsel %vm36, %v188, 0
  %v254 = vsel %vm40, %v190, 0
  %256 = vmatprep.subr.bf16.mxu0 0
  %257 = vmatpush1.bf16.msra.mxu0 %v254
  %258 = vmatprep.subr.bf16.mxu0 0
  %259 = vmatpush1.bf16.msra.mxu0 0
  %260 = vmatprep.subr.bf16.mxu0 0
  %261 = vmatpush1.bf16.msra.mxu0 0
  %262 = vmatprep.subr.bf16.mxu0 0
  %263 = vmatpush1.bf16.msra.mxu0 0
  %264 = vmatprep.subr.bf16.mxu0 0
  %265 = vmatpush1.bf16.msra.mxu0 0
  %266 = vmatprep.subr.bf16.mxu0 0
  %267 = vmatpush1.bf16.msra.mxu0 0
  %268 = vmatprep.subr.bf16.mxu0 0
  %269 = vmatpush1.bf16.msra.mxu0 0
  %270 = vmatprep.subr.bf16.mxu0 0
  %271 = vmatpush1.bf16.msra.mxu0 0
  %272 = vmatprep.subr.bf16.mxu0 0
  %273 = vmatpush1.bf16.msra.mxu0 0
  %274 = vmatprep.subr.bf16.mxu0 0
  %275 = vmatpush1.bf16.msra.mxu0 0
  %276 = vmatprep.subr.bf16.mxu0 0
  %277 = vmatpush1.bf16.msra.mxu0 0
  %278 = vmatprep.subr.bf16.mxu0 0
  %279 = vmatpush1.bf16.msra.mxu0 0
  %280 = vmatprep.subr.bf16.mxu0 0
  %281 = vmatpush1.bf16.msra.mxu0 0
  %282 = vmatprep.subr.bf16.mxu0 0
  %283 = vmatpush1.bf16.msra.mxu0 0
  %284 = vmatprep.subr.bf16.mxu0 0
  %285 = vmatpush1.bf16.msra.mxu0 0
  %286 = vmatprep.subr.bf16.mxu0 0
  %287 = vmatpush1.bf16.msra.mxu0 0
  %288 = vmatprep.mubr.bf16.mxu0 0
  %289 = vmatmul.mubr.bf16.gmra.mrb[0].mxu0 %v251
  %v290 = vpop.f32.mrb[0].mxu0
  %v291 = vadd.f32 %v245, %v290
  %v292 = vpop.f32.mrb[0].mxu0
  %v293 = vpop.f32.mrb[0].mxu0
  %v294 = vpop.f32.mrb[0].mxu0
  %295 = vdwg.mxu0
  %v296 = vpack.c.bf16 %v291, %v291
  %s297 = scalar_lea.vmem %s3, 4
  %298 = vst.msk [vmem:[%s297] sm:$0xf] %vm131, %v296
  %v299 = vunpack.c.l.bf16 %v296
  %v300 = vadd.f32 %v134, %v299
  %v301 = vmul.f32 %v299, %v299
  %v302 = vadd.f32 %v136, %v301
  %v303 = vld [vmem:[%s2] sm:$0xf]
  %v305 = vsel %vm40, %v303, 0
  %307 = vmatprep.subr.bf16.mxu0 0
  %308 = vmatpush1.bf16.msra.mxu0 %v305
  %309 = vmatprep.subr.bf16.mxu0 0
  %310 = vmatpush1.bf16.msra.mxu0 0
  %311 = vmatprep.subr.bf16.mxu0 0
  %312 = vmatpush1.bf16.msra.mxu0 0
  %313 = vmatprep.subr.bf16.mxu0 0
  %314 = vmatpush1.bf16.msra.mxu0 0
  %315 = vmatprep.subr.bf16.mxu0 0
  %316 = vmatpush1.bf16.msra.mxu0 0
  %317 = vmatprep.subr.bf16.mxu0 0
  %318 = vmatpush1.bf16.msra.mxu0 0
  %319 = vmatprep.subr.bf16.mxu0 0
  %320 = vmatpush1.bf16.msra.mxu0 0
  %321 = vmatprep.subr.bf16.mxu0 0
  %322 = vmatpush1.bf16.msra.mxu0 0
  %323 = vmatprep.subr.bf16.mxu0 0
  %324 = vmatpush1.bf16.msra.mxu0 0
  %325 = vmatprep.subr.bf16.mxu0 0
  %326 = vmatpush1.bf16.msra.mxu0 0
  %327 = vmatprep.subr.bf16.mxu0 0
  %328 = vmatpush1.bf16.msra.mxu0 0
  %329 = vmatprep.subr.bf16.mxu0 0
  %330 = vmatpush1.bf16.msra.mxu0 0
  %331 = vmatprep.subr.bf16.mxu0 0
  %332 = vmatpush1.bf16.msra.mxu0 0
  %333 = vmatprep.subr.bf16.mxu0 0
  %334 = vmatpush1.bf16.msra.mxu0 0
  %335 = vmatprep.subr.bf16.mxu0 0
  %336 = vmatpush1.bf16.msra.mxu0 0
  %337 = vmatprep.subr.bf16.mxu0 0
  %338 = vmatpush1.bf16.msra.mxu0 0
  %339 = vmatprep.mubr.bf16.mxu0 0
  %340 = vmatmul.mubr.bf16.gmra.mrb[0].mxu0 %v251
  %v341 = vpop.f32.mrb[0].mxu0
  %v342 = vadd.f32 0.0, %v341
  %v343 = vpop.f32.mrb[0].mxu0
  %v344 = vpop.f32.mrb[0].mxu0
  %v345 = vpop.f32.mrb[0].mxu0
  %346 = vdwg.mxu0
  %v347 = vpack.c.bf16 %v342, %v342
  %s348 = scalar_lea.vmem %s5, 4
  %349 = vst.msk [vmem:[%s348] sm:$0xf] %vm131, %v347
  %v350 = vunpack.c.l.bf16 %v347
  %v351 = vadd.f32 %v184, %v350
  %v352 = vmul.f32 %v350, %v350
  %v353 = vadd.f32 %v186, %v352
  %v354 = vsel %vm36, %v300, 0.0
  %v355 = vrot.slane %v354, 4
  %v356 = vadd.f32 %v354, %v355
  %v357 = vrot.slane %v356, 2
  %v358 = vadd.f32 %v356, %v357
  %v359 = vrot.slane %v358, 1
  %v360 = vadd.f32 %v358, %v359
  %vm361 = vcmask 57344
  %362 = vst.msk [vmem:[%s4] sm:$0x1] %vm361, %v360
  %v363 = vsel %vm36, %v302, 0.0
  %v364 = vrot.slane %v363, 4
  %v365 = vadd.f32 %v363, %v364
  %v366 = vrot.slane %v365, 2
  %v367 = vadd.f32 %v365, %v366
  %v368 = vrot.slane %v367, 1
  %v369 = vadd.f32 %v367, %v368
  %370 = vst.msk [vmem:[%s4 + $0x1] sm:$0x1] %vm361, %v369
  %v371 = vsel %vm36, %v351, 0.0
  %v372 = vrot.slane %v371, 4
  %v373 = vadd.f32 %v371, %v372
  %v374 = vrot.slane %v373, 2
  %v375 = vadd.f32 %v373, %v374
  %v376 = vrot.slane %v375, 1
  %v377 = vadd.f32 %v375, %v376
  %378 = vst.msk [vmem:[%s6] sm:$0x1] %vm361, %v377
  %v379 = vsel %vm36, %v353, 0.0
  %v380 = vrot.slane %v379, 4
  %v381 = vadd.f32 %v379, %v380
  %v382 = vrot.slane %v381, 2
  %v383 = vadd.f32 %v381, %v382
  %v384 = vrot.slane %v383, 1
  %v385 = vadd.f32 %v383, %v384
  %386 = vst.msk [vmem:[%s6 + $0x1] sm:$0x1] %vm361, %v385
  // Predicated region
  $region14: #{basic_block_forward.3} parent=0 // pred_check
    _
  $region15: #{basic_block_forward.3} parent=0 // pred_check_branch
    %388 = sbr.rel (0) target = $region17
  $region16: #{basic_block_forward.3} parent=0 // pred_region
    _
  $region17: #{basic_block_forward.3} parent=0 // pred_fallthru
    _
  // Predicated region
  $region18: #{basic_block_forward.3} parent=0 // pred_check
    _
  $region19: #{basic_block_forward.3} parent=0 // pred_check_branch
    %390 = sbr.rel (0) target = $region21
  $region20: #{basic_block_forward.3} parent=0 // pred_region
    _
  $region21: #{basic_block_forward.3} parent=0 // pred_fallthru
    _
  // Predicated region
  $region22: #{basic_block_forward.3} parent=0 // pred_check
    _
  $region23: #{basic_block_forward.3} parent=0 // pred_check_branch
    %392 = sbr.rel (0) target = $region25
  $region24: #{basic_block_forward.3} parent=0 // pred_region
    _
  $region25: #{basic_block_forward.3} parent=0 // pred_fallthru
    _
  // Predicated region
  $region26: #{basic_block_forward.3} parent=0 // pred_check
    _
  $region27: #{basic_block_forward.3} parent=0 // pred_check_branch
    %394 = sbr.rel (0) target = $region29
  $region28: #{basic_block_forward.3} parent=0 // pred_region
    _
  $region29: #{basic_block_forward.3} parent=0 // pred_fallthru
    _
  // Predicated region
  $region30: #{basic_block_forward.3} parent=0 // pred_check
    _
  $region31: #{basic_block_forward.3} parent=0 // pred_check_branch
    %396 = sbr.rel (0) target = $region33
  $region32: #{basic_block_forward.3} parent=0 // pred_region
    _
  $region33: #{basic_block_forward.3} parent=0 // pred_fallthru
    _
  // Predicated region
  $region34: #{basic_block_forward.3} parent=0 // pred_check
    _
  $region35: #{basic_block_forward.3} parent=0 // pred_check_branch
    %398 = sbr.rel (0) target = $region37
  $region36: #{basic_block_forward.3} parent=0 // pred_region
    _
  $region37: #{basic_block_forward.3} parent=0 // pred_fallthru
    _
  // Predicated region
  $region38: #{basic_block_forward.3} parent=0 // pred_check
    _
  $region39: #{basic_block_forward.3} parent=0 // pred_check_branch
    %400 = sbr.rel (0) target = $region41
  $region40: #{basic_block_forward.3} parent=0 // pred_region
    _
  $region41: #{basic_block_forward.3} parent=0 // pred_fallthru
    _
  // Predicated region
  $region42: #{basic_block_forward.3} parent=0 // pred_check
    _
  $region43: #{basic_block_forward.3} parent=0 // pred_check_branch
    %402 = sbr.rel (0) target = $region45
  $region44: #{basic_block_forward.3} parent=0 // pred_region
    _
  $region45: #{basic_block_forward.3} parent=0 // pred_fallthru
    _

// kernel: basic_block_forward.4
$region0: #{basic_block_forward.4}
  #allocation0 [shape = 'u32[]', space=smem, size = 0x4, offset = 0x4, fixed_abs, tag = 'smem constant byte address 0x4 - core index']
  #allocation1 [shape = 'u32[144,128]{1,0:T(1,128)}', space=vmem, size = 0x12000, scoped, tag = 'internal scratch']
  #allocation2 [shape = 'bf16[2,10,8]{2,1,0:T(8,128)(2,1)}', space=vmem, size = 0x2000, scoped, tag = 'scratch operand']
  %s0 = inlined_call_operand.vmem [shape: bf16[2,8,8], index: 0, kind: input, shape index: {}]
  %s1 = inlined_call_operand.vmem [shape: f32[1,8], index: 1, kind: input, shape index: {}]
  %s2 = inlined_call_operand.vmem [shape: f32[1,8], index: 2, kind: input, shape index: {}]
  %s3 = inlined_call_operand.vmem [shape: bf16[3,8,8], index: 3, kind: input, shape index: {}]
  %s4 = inlined_call_operand.vmem [shape: bf16[2,8,8], index: 4, kind: output, shape index: {0}]
  %s5 = inlined_call_operand.vmem [shape: f32[1,2,8], index: 5, kind: output, shape index: {1}]
  %6 = xla_tuple %s4, %s5
  %s7 = sld [smem:[#allocation0]]
  $region34: #{basic_block_forward.4} parent=0
    _
  %s9 = ssub.s32 1, %s7
  %s10 = scalar_select 0, %s9, %s7
  // Predicated region
  $region2: #{basic_block_forward.4} parent=0 // pred_check
    _
  $region3: #{basic_block_forward.4} parent=0 // pred_check_branch
    %12 = sbr.rel (0) target = $region5
  $region4: #{basic_block_forward.4} parent=0 // pred_region
    _
  $region5: #{basic_block_forward.4} parent=0 // pred_fallthru
    _
  // Predicated region
  $region6: #{basic_block_forward.4} parent=0 // pred_check
    _
  $region7: #{basic_block_forward.4} parent=0 // pred_check_branch
    %14 = sbr.rel (0) target = $region9
  $region8: #{basic_block_forward.4} parent=0 // pred_region
    _
  $region9: #{basic_block_forward.4} parent=0 // pred_fallthru
    _
  // Predicated region
  $region10: #{basic_block_forward.4} parent=0 // pred_check
    _
  $region11: #{basic_block_forward.4} parent=0 // pred_check_branch
    %16 = sbr.rel (0) target = $region13
  $region12: #{basic_block_forward.4} parent=0 // pred_region
    _
  $region13: #{basic_block_forward.4} parent=0 // pred_fallthru
    _
  // Predicated region
  $region14: #{basic_block_forward.4} parent=0 // pred_check
    _
  $region15: #{basic_block_forward.4} parent=0 // pred_check_branch
    %18 = sbr.rel (0) target = $region17
  $region16: #{basic_block_forward.4} parent=0 // pred_region
    _
  $region17: #{basic_block_forward.4} parent=0 // pred_fallthru
    _
  %v20 = vld [vmem:[%s0] sm:$0xf]
  %v21 = vld [vmem:[%s0 + $0x4] sm:$0xf]
  %v22 = vunpack.c.l.bf16 %v20
  %v23 = vunpack.c.l.bf16 %v21
  %v24 = vld [vmem:[%s1] sm:$0x1]
  %v26 = vlaneseq
  %v27 = vshrl.u32 %v26, 7
  %v28 = vsub.s32 0, %v27
  %v29 = vrot.slane %v24, %v28
  %v31 = vmul.f32 %v22, %v29
  %v32 = vmul.f32 %v23, %v29
  %v33 = vld [vmem:[%s2] sm:$0x1]
  %v35 = vlaneseq
  %v36 = vshrl.u32 %v35, 7
  %v37 = vsub.s32 0, %v36
  %v38 = vrot.slane %v33, %v37
  %v40 = vadd.f32 %v31, %v38
  %v41 = vadd.f32 %v32, %v38
  %v42 = vmax.f32 %v40, 0.0
  %v43 = vmax.f32 %v41, 0.0
  %vm44 = vcmask 57344
  %vm45 = vsmask.f32 256
  %vm46 = vmand %vm44, %vm45
  %v47 = vld [vmem:[#allocation2] sm:$0x1]
  %v48 = vsel %vm46, 0, %v47
  %49 = vst [vmem:[#allocation2] sm:$0x1] %v48
  %v50 = vld [vmem:[#allocation2 + $0x8] sm:$0x1]
  %v51 = vsel %vm46, 0, %v50
  %52 = vst [vmem:[#allocation2 + $0x8] sm:$0x1] %v51
  %vm53 = vsmask.f32 7938
  %vm54 = vmand %vm44, %vm53
  %v55 = vld [vmem:[#allocation2 + $0x4] sm:$0x1]
  %v56 = vsel %vm54, 0, %v55
  %57 = vst [vmem:[#allocation2 + $0x4] sm:$0x1] %v56
  %v58 = vld [vmem:[#allocation2 + $0xc] sm:$0x1]
  %v59 = vsel %vm54, 0, %v58
  %60 = vst [vmem:[#allocation2 + $0xc] sm:$0x1] %v59
  %v61 = vpack.c.bf16 %v42, %v42
  %v62 = vpack.c.bf16 %v43, %v43
  %v65 = vunpack.c.l.b16 %v61
  %v66 = vunpack.c.l.b16 %v62
  %v67 = vpack.c.b16 %v65, %v65
  %v68 = vpack.c.b16 %v66, %v66
  %v70 = vshrl.u32 %v67, 16
  %v72 = vrot.slane %v70, 7
  %v73 = vshll.u32 %v67, 16
  %v75 = vor.u32 %v72, %v73
  %v76 = vrot.slane %v72, 4
  %v78 = vshrl.u32 %v68, 16
  %v80 = vrot.slane %v78, 7
  %v81 = vshll.u32 %v68, 16
  %v83 = vor.u32 %v80, %v81
  %v84 = vrot.slane %v80, 4
  %vm89 = vcmask 60416
  %vm90 = vmand %vm89, %vm53
  %v91 = vld [vmem:[#allocation2] sm:$0xf]
  %v92 = vsel %vm90, %v75, %v91
  %93 = vst [vmem:[#allocation2] sm:$0xf] %v92
  %v94 = vld [vmem:[#allocation2 + $0x4] sm:$0x1]
  %v95 = vsel %vm46, %v76, %v94
  %96 = vst [vmem:[#allocation2 + $0x4] sm:$0x1] %v95
  %v97 = vld [vmem:[#allocation2 + $0x8] sm:$0xf]
  %v98 = vsel %vm90, %v83, %v97
  %99 = vst [vmem:[#allocation2 + $0x8] sm:$0xf] %v98
  %v100 = vld [vmem:[#allocation2 + $0xc] sm:$0x1]
  %v101 = vsel %vm46, %v84, %v100
  %102 = vst [vmem:[#allocation2 + $0xc] sm:$0x1] %v101
  %v103 = vld [vmem:[#allocation2] sm:$0xf]
  %v104 = vld [vmem:[#allocation2 + $0x4] sm:$0x1]
  %v105 = vld [vmem:[%s3] sm:$0xf]
  %s106 = scalar_lea.vmem %s3, 4
  %v107 = vld [vmem:[%s106] sm:$0xf]
  %v110 = vunpack.c.l.b16 %v103
  %v111 = vunpack.c.l.b16 %v104
  %v112 = vpack.c.b16 %v111, %v110
  %v114 = vshrl.u32 %v112, 16
  %v116 = vshll.u32 %v112, 16
  %v118 = vrot.slane %v116, 1
  %v119 = vor.u32 %v114, %v118
  %vm120 = vcmask 64512
  %v122 = vsel %vm120, %v119, 0
  %vm124 = vcmask 1043456
  %v126 = vsel %vm124, %v107, 0
  %128 = vmatprep.subr.bf16.mxu0 0
  %129 = vmatpush1.bf16.msra.mxu0 %v126
  %130 = vmatprep.subr.bf16.mxu0 0
  %131 = vmatpush1.bf16.msra.mxu0 0
  %132 = vmatprep.subr.bf16.mxu0 0
  %133 = vmatpush1.bf16.msra.mxu0 0
  %134 = vmatprep.subr.bf16.mxu0 0
  %135 = vmatpush1.bf16.msra.mxu0 0
  %136 = vmatprep.subr.bf16.mxu0 0
  %137 = vmatpush1.bf16.msra.mxu0 0
  %138 = vmatprep.subr.bf16.mxu0 0
  %139 = vmatpush1.bf16.msra.mxu0 0
  %140 = vmatprep.subr.bf16.mxu0 0
  %141 = vmatpush1.bf16.msra.mxu0 0
  %142 = vmatprep.subr.bf16.mxu0 0
  %143 = vmatpush1.bf16.msra.mxu0 0
  %144 = vmatprep.subr.bf16.mxu0 0
  %145 = vmatpush1.bf16.msra.mxu0 0
  %146 = vmatprep.subr.bf16.mxu0 0
  %147 = vmatpush1.bf16.msra.mxu0 0
  %148 = vmatprep.subr.bf16.mxu0 0
  %149 = vmatpush1.bf16.msra.mxu0 0
  %150 = vmatprep.subr.bf16.mxu0 0
  %151 = vmatpush1.bf16.msra.mxu0 0
  %152 = vmatprep.subr.bf16.mxu0 0
  %153 = vmatpush1.bf16.msra.mxu0 0
  %154 = vmatprep.subr.bf16.mxu0 0
  %155 = vmatpush1.bf16.msra.mxu0 0
  %156 = vmatprep.subr.bf16.mxu0 0
  %157 = vmatpush1.bf16.msra.mxu0 0
  %158 = vmatprep.subr.bf16.mxu0 0
  %159 = vmatpush1.bf16.msra.mxu0 0
  %160 = vmatprep.mubr.bf16.mxu0 0
  %161 = vmatmul.mubr.bf16.gmra.mrb[0].mxu0 %v122
  %v162 = vpop.f32.mrb[0].mxu0
  %v163 = vadd.f32 0.0, %v162
  %v164 = vpop.f32.mrb[0].mxu0
  %v165 = vpop.f32.mrb[0].mxu0
  %v166 = vpop.f32.mrb[0].mxu0
  %167 = vdwg.mxu0
  %v169 = vsel %vm120, %v103, 0
  %v172 = vsel %vm124, %v105, 0
  %174 = vmatprep.subr.bf16.mxu0 0
  %175 = vmatpush1.bf16.msra.mxu0 %v172
  %176 = vmatprep.subr.bf16.mxu0 0
  %177 = vmatpush1.bf16.msra.mxu0 0
  %178 = vmatprep.subr.bf16.mxu0 0
  %179 = vmatpush1.bf16.msra.mxu0 0
  %180 = vmatprep.subr.bf16.mxu0 0
  %181 = vmatpush1.bf16.msra.mxu0 0
  %182 = vmatprep.subr.bf16.mxu0 0
  %183 = vmatpush1.bf16.msra.mxu0 0
  %184 = vmatprep.subr.bf16.mxu0 0
  %185 = vmatpush1.bf16.msra.mxu0 0
  %186 = vmatprep.subr.bf16.mxu0 0
  %187 = vmatpush1.bf16.msra.mxu0 0
  %188 = vmatprep.subr.bf16.mxu0 0
  %189 = vmatpush1.bf16.msra.mxu0 0
  %190 = vmatprep.subr.bf16.mxu0 0
  %191 = vmatpush1.bf16.msra.mxu0 0
  %192 = vmatprep.subr.bf16.mxu0 0
  %193 = vmatpush1.bf16.msra.mxu0 0
  %194 = vmatprep.subr.bf16.mxu0 0
  %195 = vmatpush1.bf16.msra.mxu0 0
  %196 = vmatprep.subr.bf16.mxu0 0
  %197 = vmatpush1.bf16.msra.mxu0 0
  %198 = vmatprep.subr.bf16.mxu0 0
  %199 = vmatpush1.bf16.msra.mxu0 0
  %200 = vmatprep.subr.bf16.mxu0 0
  %201 = vmatpush1.bf16.msra.mxu0 0
  %202 = vmatprep.subr.bf16.mxu0 0
  %203 = vmatpush1.bf16.msra.mxu0 0
  %204 = vmatprep.subr.bf16.mxu0 0
  %205 = vmatpush1.bf16.msra.mxu0 0
  %206 = vmatprep.mubr.bf16.mxu0 0
  %207 = vmatmul.mubr.bf16.gmra.mrb[0].mxu0 %v169
  %v208 = vpop.f32.mrb[0].mxu0
  %v209 = vadd.f32 %v163, %v208
  %v210 = vpop.f32.mrb[0].mxu0
  %v211 = vpop.f32.mrb[0].mxu0
  %v212 = vpop.f32.mrb[0].mxu0
  %213 = vdwg.mxu0
  %s214 = scalar_lea.vmem %s3, 8
  %v215 = vld [vmem:[%s214] sm:$0xf]
  %v216 = vrot.slane %v112, 1
  %v218 = vsel %vm120, %v216, 0
  %v221 = vsel %vm124, %v215, 0
  %223 = vmatprep.subr.bf16.mxu0 0
  %224 = vmatpush1.bf16.msra.mxu0 %v221
  %225 = vmatprep.subr.bf16.mxu0 0
  %226 = vmatpush1.bf16.msra.mxu0 0
  %227 = vmatprep.subr.bf16.mxu0 0
  %228 = vmatpush1.bf16.msra.mxu0 0
  %229 = vmatprep.subr.bf16.mxu0 0
  %230 = vmatpush1.bf16.msra.mxu0 0
  %231 = vmatprep.subr.bf16.mxu0 0
  %232 = vmatpush1.bf16.msra.mxu0 0
  %233 = vmatprep.subr.bf16.mxu0 0
  %234 = vmatpush1.bf16.msra.mxu0 0
  %235 = vmatprep.subr.bf16.mxu0 0
  %236 = vmatpush1.bf16.msra.mxu0 0
  %237 = vmatprep.subr.bf16.mxu0 0
  %238 = vmatpush1.bf16.msra.mxu0 0
  %239 = vmatprep.subr.bf16.mxu0 0
  %240 = vmatpush1.bf16.msra.mxu0 0
  %241 = vmatprep.subr.bf16.mxu0 0
  %242 = vmatpush1.bf16.msra.mxu0 0
  %243 = vmatprep.subr.bf16.mxu0 0
  %244 = vmatpush1.bf16.msra.mxu0 0
  %245 = vmatprep.subr.bf16.mxu0 0
  %246 = vmatpush1.bf16.msra.mxu0 0
  %247 = vmatprep.subr.bf16.mxu0 0
  %248 = vmatpush1.bf16.msra.mxu0 0
  %249 = vmatprep.subr.bf16.mxu0 0
  %250 = vmatpush1.bf16.msra.mxu0 0
  %251 = vmatprep.subr.bf16.mxu0 0
  %252 = vmatpush1.bf16.msra.mxu0 0
  %253 = vmatprep.subr.bf16.mxu0 0
  %254 = vmatpush1.bf16.msra.mxu0 0
  %255 = vmatprep.mubr.bf16.mxu0 0
  %256 = vmatmul.mubr.bf16.gmra.mrb[0].mxu0 %v218
  %v257 = vpop.f32.mrb[0].mxu0
  %v258 = vadd.f32 0.0, %v257
  %v259 = vpop.f32.mrb[0].mxu0
  %v260 = vpop.f32.mrb[0].mxu0
  %v261 = vpop.f32.mrb[0].mxu0
  %262 = vdwg.mxu0
  %v263 = vadd.f32 %v209, %v258
  %v264 = vpack.c.bf16 %v263, %v263
  %vm265 = vcmask 60416
  %266 = vst.msk [vmem:[%s4] sm:$0xf] %vm265, %v264
  %v267 = vunpack.c.l.bf16 %v264
  %v268 = vadd.f32 %v267, 0.0
  %v269 = vmul.f32 %v267, %v267
  %v270 = vadd.f32 %v269, 0.0
  %s271 = scalar_lea.vmem [#allocation2], 8
  %v272 = vld [vmem:[%s271] sm:$0xf]
  %v273 = vld [vmem:[%s271 + $0x4] sm:$0x1]
  %v274 = vld [vmem:[%s3] sm:$0xf]
  %v275 = vld [vmem:[%s106] sm:$0xf]
  %v278 = vunpack.c.l.b16 %v272
  %v279 = vunpack.c.l.b16 %v273
  %v280 = vpack.c.b16 %v279, %v278
  %v282 = vshrl.u32 %v280, 16
  %v284 = vshll.u32 %v280, 16
  %v286 = vrot.slane %v284, 1
  %v287 = vor.u32 %v282, %v286
  %v289 = vsel %vm120, %v287, 0
  %v292 = vsel %vm124, %v275, 0
  %294 = vmatprep.subr.bf16.mxu0 0
  %295 = vmatpush1.bf16.msra.mxu0 %v292
  %296 = vmatprep.subr.bf16.mxu0 0
  %297 = vmatpush1.bf16.msra.mxu0 0
  %298 = vmatprep.subr.bf16.mxu0 0
  %299 = vmatpush1.bf16.msra.mxu0 0
  %300 = vmatprep.subr.bf16.mxu0 0
  %301 = vmatpush1.bf16.msra.mxu0 0
  %302 = vmatprep.subr.bf16.mxu0 0
  %303 = vmatpush1.bf16.msra.mxu0 0
  %304 = vmatprep.subr.bf16.mxu0 0
  %305 = vmatpush1.bf16.msra.mxu0 0
  %306 = vmatprep.subr.bf16.mxu0 0
  %307 = vmatpush1.bf16.msra.mxu0 0
  %308 = vmatprep.subr.bf16.mxu0 0
  %309 = vmatpush1.bf16.msra.mxu0 0
  %310 = vmatprep.subr.bf16.mxu0 0
  %311 = vmatpush1.bf16.msra.mxu0 0
  %312 = vmatprep.subr.bf16.mxu0 0
  %313 = vmatpush1.bf16.msra.mxu0 0
  %314 = vmatprep.subr.bf16.mxu0 0
  %315 = vmatpush1.bf16.msra.mxu0 0
  %316 = vmatprep.subr.bf16.mxu0 0
  %317 = vmatpush1.bf16.msra.mxu0 0
  %318 = vmatprep.subr.bf16.mxu0 0
  %319 = vmatpush1.bf16.msra.mxu0 0
  %320 = vmatprep.subr.bf16.mxu0 0
  %321 = vmatpush1.bf16.msra.mxu0 0
  %322 = vmatprep.subr.bf16.mxu0 0
  %323 = vmatpush1.bf16.msra.mxu0 0
  %324 = vmatprep.subr.bf16.mxu0 0
  %325 = vmatpush1.bf16.msra.mxu0 0
  %326 = vmatprep.mubr.bf16.mxu0 0
  %327 = vmatmul.mubr.bf16.gmra.mrb[0].mxu0 %v289
  %v328 = vpop.f32.mrb[0].mxu0
  %v329 = vadd.f32 0.0, %v328
  %v330 = vpop.f32.mrb[0].mxu0
  %v331 = vpop.f32.mrb[0].mxu0
  %v332 = vpop.f32.mrb[0].mxu0
  %333 = vdwg.mxu0
  %v335 = vsel %vm120, %v272, 0
  %v338 = vsel %vm124, %v274, 0
  %340 = vmatprep.subr.bf16.mxu0 0
  %341 = vmatpush1.bf16.msra.mxu0 %v338
  %342 = vmatprep.subr.bf16.mxu0 0
  %343 = vmatpush1.bf16.msra.mxu0 0
  %344 = vmatprep.subr.bf16.mxu0 0
  %345 = vmatpush1.bf16.msra.mxu0 0
  %346 = vmatprep.subr.bf16.mxu0 0
  %347 = vmatpush1.bf16.msra.mxu0 0
  %348 = vmatprep.subr.bf16.mxu0 0
  %349 = vmatpush1.bf16.msra.mxu0 0
  %350 = vmatprep.subr.bf16.mxu0 0
  %351 = vmatpush1.bf16.msra.mxu0 0
  %352 = vmatprep.subr.bf16.mxu0 0
  %353 = vmatpush1.bf16.msra.mxu0 0
  %354 = vmatprep.subr.bf16.mxu0 0
  %355 = vmatpush1.bf16.msra.mxu0 0
  %356 = vmatprep.subr.bf16.mxu0 0
  %357 = vmatpush1.bf16.msra.mxu0 0
  %358 = vmatprep.subr.bf16.mxu0 0
  %359 = vmatpush1.bf16.msra.mxu0 0
  %360 = vmatprep.subr.bf16.mxu0 0
  %361 = vmatpush1.bf16.msra.mxu0 0
  %362 = vmatprep.subr.bf16.mxu0 0
  %363 = vmatpush1.bf16.msra.mxu0 0
  %364 = vmatprep.subr.bf16.mxu0 0
  %365 = vmatpush1.bf16.msra.mxu0 0
  %366 = vmatprep.subr.bf16.mxu0 0
  %367 = vmatpush1.bf16.msra.mxu0 0
  %368 = vmatprep.subr.bf16.mxu0 0
  %369 = vmatpush1.bf16.msra.mxu0 0
  %370 = vmatprep.subr.bf16.mxu0 0
  %371 = vmatpush1.bf16.msra.mxu0 0
  %372 = vmatprep.mubr.bf16.mxu0 0
  %373 = vmatmul.mubr.bf16.gmra.mrb[0].mxu0 %v335
  %v374 = vpop.f32.mrb[0].mxu0
  %v375 = vadd.f32 %v329, %v374
  %v376 = vpop.f32.mrb[0].mxu0
  %v377 = vpop.f32.mrb[0].mxu0
  %v378 = vpop.f32.mrb[0].mxu0
  %379 = vdwg.mxu0
  %v380 = vld [vmem:[%s214] sm:$0xf]
  %v381 = vrot.slane %v280, 1
  %v383 = vsel %vm120, %v381, 0
  %v386 = vsel %vm124, %v380, 0
  %388 = vmatprep.subr.bf16.mxu0 0
  %389 = vmatpush1.bf16.msra.mxu0 %v386
  %390 = vmatprep.subr.bf16.mxu0 0
  %391 = vmatpush1.bf16.msra.mxu0 0
  %392 = vmatprep.subr.bf16.mxu0 0
  %393 = vmatpush1.bf16.msra.mxu0 0
  %394 = vmatprep.subr.bf16.mxu0 0
  %395 = vmatpush1.bf16.msra.mxu0 0
  %396 = vmatprep.subr.bf16.mxu0 0
  %397 = vmatpush1.bf16.msra.mxu0 0
  %398 = vmatprep.subr.bf16.mxu0 0
  %399 = vmatpush1.bf16.msra.mxu0 0
  %400 = vmatprep.subr.bf16.mxu0 0
  %401 = vmatpush1.bf16.msra.mxu0 0
  %402 = vmatprep.subr.bf16.mxu0 0
  %403 = vmatpush1.bf16.msra.mxu0 0
  %404 = vmatprep.subr.bf16.mxu0 0
  %405 = vmatpush1.bf16.msra.mxu0 0
  %406 = vmatprep.subr.bf16.mxu0 0
  %407 = vmatpush1.bf16.msra.mxu0 0
  %408 = vmatprep.subr.bf16.mxu0 0
  %409 = vmatpush1.bf16.msra.mxu0 0
  %410 = vmatprep.subr.bf16.mxu0 0
  %411 = vmatpush1.bf16.msra.mxu0 0
  %412 = vmatprep.subr.bf16.mxu0 0
  %413 = vmatpush1.bf16.msra.mxu0 0
  %414 = vmatprep.subr.bf16.mxu0 0
  %415 = vmatpush1.bf16.msra.mxu0 0
  %416 = vmatprep.subr.bf16.mxu0 0
  %417 = vmatpush1.bf16.msra.mxu0 0
  %418 = vmatprep.subr.bf16.mxu0 0
  %419 = vmatpush1.bf16.msra.mxu0 0
  %420 = vmatprep.mubr.bf16.mxu0 0
  %421 = vmatmul.mubr.bf16.gmra.mrb[0].mxu0 %v383
  %v422 = vpop.f32.mrb[0].mxu0
  %v423 = vadd.f32 0.0, %v422
  %v424 = vpop.f32.mrb[0].mxu0
  %v425 = vpop.f32.mrb[0].mxu0
  %v426 = vpop.f32.mrb[0].mxu0
  %427 = vdwg.mxu0
  %v428 = vadd.f32 %v375, %v423
  %v429 = vpack.c.bf16 %v428, %v428
  %s430 = scalar_lea.vmem %s4, 4
  %431 = vst.msk [vmem:[%s430] sm:$0xf] %vm265, %v429
  %v432 = vunpack.c.l.bf16 %v429
  %v433 = vadd.f32 %v268, %v432
  %v434 = vmul.f32 %v432, %v432
  %v435 = vadd.f32 %v270, %v434
  %v436 = vsel %vm120, %v433, 0.0
  %v437 = vrot.slane %v436, 4
  %v438 = vadd.f32 %v436, %v437
  %v439 = vrot.slane %v438, 2
  %v440 = vadd.f32 %v438, %v439
  %v441 = vrot.slane %v440, 1
  %v442 = vadd.f32 %v440, %v441
  %vm443 = vcmask 57344
  %444 = vst.msk [vmem:[%s5] sm:$0x1] %vm443, %v442
  %v445 = vsel %vm120, %v435, 0.0
  %v446 = vrot.slane %v445, 4
  %v447 = vadd.f32 %v445, %v446
  %v448 = vrot.slane %v447, 2
  %v449 = vadd.f32 %v447, %v448
  %v450 = vrot.slane %v449, 1
  %v451 = vadd.f32 %v449, %v450
  %452 = vst.msk [vmem:[%s5 + $0x1] sm:$0x1] %vm443, %v451
  // Predicated region
  $region18: #{basic_block_forward.4} parent=0 // pred_check
    _
  $region19: #{basic_block_forward.4} parent=0 // pred_check_branch
    %454 = sbr.rel (0) target = $region21
  $region20: #{basic_block_forward.4} parent=0 // pred_region
    _
  $region21: #{basic_block_forward.4} parent=0 // pred_fallthru
    _
  // Predicated region
  $region22: #{basic_block_forward.4} parent=0 // pred_check
    _
  $region23: #{basic_block_forward.4} parent=0 // pred_check_branch
    %456 = sbr.rel (0) target = $region25
  $region24: #{basic_block_forward.4} parent=0 // pred_region
    _
  $region25: #{basic_block_forward.4} parent=0 // pred_fallthru
    _
  // Predicated region
  $region26: #{basic_block_forward.4} parent=0 // pred_check
    _
  $region27: #{basic_block_forward.4} parent=0 // pred_check_branch
    %458 = sbr.rel (0) target = $region29
  $region28: #{basic_block_forward.4} parent=0 // pred_region
    _
  $region29: #{basic_block_forward.4} parent=0 // pred_fallthru
    _
  // Predicated region
  $region30: #{basic_block_forward.4} parent=0 // pred_check
    _
  $region31: #{basic_block_forward.4} parent=0 // pred_check_branch
    %460 = sbr.rel (0) target = $region33
  $region32: #{basic_block_forward.4} parent=0 // pred_region
    _
  $region33: #{basic_block_forward.4} parent=0 // pred_fallthru
    _

</llo_original>
